<compile_context>
chip_gen: v7x
topology: tpu7x:2x2x1
jax: 0.10.0
libtpu: 0.0.40
codegen_flags: <defaults>
</compile_context>

<pallas_src>
import functools

import jax
import jax.numpy as jnp
import numpy as np
from jax import lax
from jax.experimental import pallas as pl
from jax.experimental.pallas import tpu as pltpu

LN_EPS = 1e-5  # PyTorch nn.LayerNorm default


def _condition_kernel(
    # static (bound via functools.partial)
    n_valid, tile_n,
    # scalar prefetch (SMEM)
    tid_ref,          # (1,) int32 topic id (also consumed by the topic-row index_map)
    # inputs (VMEM)
    ne_ref,           # (TN, E)   f32   node-embedding tile
    rw1_ref,          # (E, H)    bf16  relevance Linear1 weight
    rb1_ref,          # (1, H)    f32
    rg_ref,           # (1, H)    f32   relevance LayerNorm gamma
    rbeta_ref,        # (1, H)    f32
    rw2_ref,          # (1, H)    f32   relevance Linear2 weight (row form)
    rb2_ref,          # (1, 1)    f32
    trow_ref,         # (1, Te)   f32   selected topic-embedding row (squeezed leading dim)
    tw1e_ref,         # (E, H)    f32   conditioner Linear1 (embedding half)
    tw1t_ref,         # (Te, H)   f32   conditioner Linear1 (topic half)
    tb1_ref,          # (1, H)    f32
    tg_ref,           # (1, H)    f32
    tbeta_ref,        # (1, H)    f32
    tw2_ref,          # (H, E)    f32
    tb2_ref,          # (1, E)    f32
    # outputs
    s_out_ref,        # (1, TN)   f32   raw relevance scores for this tile (streamed)
    lse_out_ref,      # (1, 1)    f32   logsumexp over all nodes (resident)
    cond_out_ref,     # (1, E)    f32   final condition vector (resident)
    # VMEM scratch (online-softmax state)
    m_sc,             # (1, 1) f32 running max
    l_sc,             # (1, 1) f32 running denominator
    acc_sc,           # (1, E) f32 running weighted-sum of embeddings
):
    i = pl.program_id(0)
    last = pl.num_programs(0) - 1

    @pl.when(i == 0)
    def _init():
        m_sc[...] = jnp.full_like(m_sc, -jnp.inf)
        l_sc[...] = jnp.zeros_like(l_sc)
        acc_sc[...] = jnp.zeros_like(acc_sc)

    ne = ne_ref[...].astype(jnp.bfloat16)                               # cast in-kernel

    # ---- relevance_scorer: Linear -> LayerNorm -> ReLU ----
    h = jnp.dot(ne, rw1_ref[...], preferred_element_type=jnp.float32) + rb1_ref[...]

    # LayerNorm row stats on the MXU (ones-column contraction) instead of XLU lane reductions
    hdim = h.shape[-1]
    ones_col = jnp.ones((hdim, 1), jnp.float32)
    inv_h = 1.0 / hdim
    mu = jnp.dot(h, ones_col, preferred_element_type=jnp.float32) * inv_h       # (TN, 1)
    ex2 = jnp.dot(h * h, ones_col, preferred_element_type=jnp.float32) * inv_h  # (TN, 1)
    var = ex2 - mu * mu
    h = (h - mu) * lax.rsqrt(var + LN_EPS) * rg_ref[...] + rbeta_ref[...]
    h = jnp.maximum(h, 0.0)                                             # (TN, H) f32

    # ---- scores, lane-dense (1, TN): rw2_row @ h^T on the MXU ----
    s = lax.dot_general(rw2_ref[...], h, (((1,), (1,)), ((), ())),
                        preferred_element_type=jnp.float32) + rb2_ref[...]

    if n_valid % tile_n != 0:
        # Padded (zero) node rows exist: mask their scores to -inf for the softmax.
        idx = lax.broadcasted_iota(jnp.int32, s.shape, 1) + i * tile_n
        s = jnp.where(idx < n_valid, s, -jnp.inf)

    # stream raw scores to HBM (pipelined writeback); normalized in the wrapper
    s_out_ref[...] = s

    # ---- online softmax over nodes + MXU-pooled partial base condition ----
    m_prev = m_sc[...]
    m_new = jnp.maximum(m_prev, jnp.max(s, axis=-1, keepdims=True))
    alpha = jnp.exp(m_prev - m_new)
    p = jnp.exp(s - m_new)                                              # (1, TN)
    l_sc[...] = alpha * l_sc[...] + jnp.sum(p, axis=-1, keepdims=True)
    acc_sc[...] = alpha * acc_sc[...] + jnp.dot(
        p.astype(jnp.bfloat16), ne, preferred_element_type=jnp.float32)  # (1, E)
    m_sc[...] = m_new

    @pl.when(i == last)
    def _finalize():
        l = l_sc[...]
        inv_l = 1.0 / l                                                 # exact; (1,1) scalar
        lse_out_ref[...] = m_sc[...] + jnp.log(l)                       # for wrapper softmax

        base = acc_sc[...] * inv_l                                      # (1, E)

        # ---- topic_conditioner on concat([base, topic_emb]) == split matmul ----
        temb = trow_ref[...]                                            # (1, Te)
        h2 = (jnp.dot(base, tw1e_ref[...], preferred_element_type=jnp.float32)
              + jnp.dot(temb, tw1t_ref[...], preferred_element_type=jnp.float32)
              + tb1_ref[...])                                           # (1, H)
        inv_h2 = 1.0 / h2.shape[-1]
        mu2 = jnp.sum(h2, axis=-1, keepdims=True) * inv_h2
        ex22 = jnp.sum(h2 * h2, axis=-1, keepdims=True) * inv_h2
        var2 = ex22 - mu2 * mu2
        h2 = (h2 - mu2) * lax.rsqrt(var2 + LN_EPS) * tg_ref[...] + tbeta_ref[...]
        h2 = jnp.maximum(h2, 0.0)
        cond_out_ref[...] = (jnp.dot(h2, tw2_ref[...], preferred_element_type=jnp.float32)
                             + tb2_ref[...])                            # (1, E)


def _pick_node_tile(n, target):
    """Node tile (multiple of 128, <= target) and padded N (multiple of the tile)."""
    n128 = max(128, ((n + 127) // 128) * 128)
    tn = max(128, min((max(target, 128) // 128) * 128, n128))
    while n128 % tn != 0:
        tn -= 128
    return tn, n128


def _full_spec(arr):
    zeros = (0,) * arr.ndim
    return pl.BlockSpec(arr.shape, lambda i, tid, _z=zeros: _z)


@functools.partial(jax.jit, static_argnames=("tile_n",))
def topic_conditioned_forward(node_embeddings, topic_ids, params, *, tile_n=2048):
    """Returns (relevance_weights [N], condition [1, E])."""
    n, e = node_embeddings.shape
    tn, n_pad = _pick_node_tile(n, tile_n)
    num_tiles = n_pad // tn
    if n_pad != n:
        node_embeddings = jnp.pad(node_embeddings, ((0, n_pad - n), (0, 0)))

    # bf16 only for the tiny relevance Linear1 weight (one-time cast); node embeddings
    # stay f32 in HBM and are cast to bf16 inside the kernel (no extra HBM pass).
    rw1_bf16 = params["rw1"].astype(jnp.bfloat16)
    rw2_row = params["rw2"].reshape(1, -1)                              # (1, H)
    ttab3 = params["topic_embedding"][:, None, :]                       # (T, 1, Te)
    te = ttab3.shape[-1]
    topic_ids_i32 = topic_ids.astype(jnp.int32)

    inputs = (
        node_embeddings,
        rw1_bf16, params["rb1"], params["rg"], params["rbeta"], rw2_row, params["rb2"],
        ttab3,
        params["tw1e"], params["tw1t"], params["tb1"], params["tg"], params["tbeta"],
        params["tw2"], params["tb2"],
    )

    in_specs = [pl.BlockSpec((tn, e), lambda i, tid: (i, 0))]           # node tile
    in_specs += [_full_spec(a) for a in inputs[1:7]]                    # small relevance params
    # DMA only the selected topic row (data-dependent index from the prefetched topic id)
    in_specs += [pl.BlockSpec((None, 1, te), lambda i, tid: (tid[0], 0, 0))]
    in_specs += [_full_spec(a) for a in inputs[8:]]                     # conditioner params

    out_specs = (
        pl.BlockSpec((None, 1, tn), lambda i, tid: (i, 0, 0)),          # raw scores (streamed)
        pl.BlockSpec((1, 1), lambda i, tid: (0, 0)),                    # logsumexp (resident)
        pl.BlockSpec((1, e), lambda i, tid: (0, 0)),                    # condition (resident)
    )

    grid_spec = pltpu.PrefetchScalarGridSpec(
        num_scalar_prefetch=1,
        grid=(num_tiles,),
        in_specs=in_specs,
        out_specs=out_specs,
        scratch_shapes=[
            pltpu.VMEM((1, 1), jnp.float32),   # running max
            pltpu.VMEM((1, 1), jnp.float32),   # running denominator
            pltpu.VMEM((1, e), jnp.float32),   # running weighted embedding sum
        ],
    )

    kernel = functools.partial(_condition_kernel, n, tn)

    scores_t, lse, condition = pl.pallas_call(
        kernel,
        grid_spec=grid_spec,
        out_shape=(
            jax.ShapeDtypeStruct((num_tiles, 1, tn), jnp.float32),
            jax.ShapeDtypeStruct((1, 1), jnp.float32),
            jax.ShapeDtypeStruct((1, e), jnp.float32),
        ),
        compiler_params=pltpu.CompilerParams(
            dimension_semantics=("arbitrary",),   # online-softmax carry over the node axis
            vmem_limit_bytes=48 * 1024 * 1024,    # > v5e/v6e defaults, < v7x 64 MiB physical
        ),
    )(topic_ids_i32, *inputs)

    # softmax normalization: one fused XLA elementwise pass over N (exact, f32)
    weights = jnp.exp(scores_t.reshape(n_pad)[:n] - lse[0, 0])
    return weights, condition


def init_params(key, embedding_dim, hidden_dim, topic_embedding_dim, num_topics):
    ks = jax.random.split(key, 8)
    scale = 0.05
    p = {
        # relevance_scorer
        "rw1": scale * jax.random.normal(ks[0], (embedding_dim, hidden_dim), jnp.float32),
        "rb1": jnp.zeros((1, hidden_dim), jnp.float32),
        "rg": jnp.ones((1, hidden_dim), jnp.float32),
        "rbeta": jnp.zeros((1, hidden_dim), jnp.float32),
        "rw2": scale * jax.random.normal(ks[1], (hidden_dim, 1), jnp.float32),
        "rb2": jnp.zeros((1, 1), jnp.float32),
        # topic embedding table
        "topic_embedding": jax.random.normal(ks[2], (num_topics, topic_embedding_dim), jnp.float32),
        # topic_conditioner (Linear1 split into embedding / topic halves)
        "tw1e": scale * jax.random.normal(ks[3], (embedding_dim, hidden_dim), jnp.float32),
        "tw1t": scale * jax.random.normal(ks[4], (topic_embedding_dim, hidden_dim), jnp.float32),
        "tb1": jnp.zeros((1, hidden_dim), jnp.float32),
        "tg": jnp.ones((1, hidden_dim), jnp.float32),
        "tbeta": jnp.zeros((1, hidden_dim), jnp.float32),
        "tw2": scale * jax.random.normal(ks[5], (hidden_dim, embedding_dim), jnp.float32),
        "tb2": jnp.zeros((1, embedding_dim), jnp.float32),
    }
    return p


def reference_forward(node_embeddings, topic_ids, params):
    """Pure-JAX f32 reference of the same math for a correctness check."""
    def ln(x, g, b):
        mu = jnp.mean(x, axis=-1, keepdims=True)
        var = jnp.mean((x - mu) ** 2, axis=-1, keepdims=True)
        return (x - mu) / jnp.sqrt(var + LN_EPS) * g + b

    h = jnp.maximum(ln(node_embeddings @ params["rw1"] + params["rb1"],
                       params["rg"], params["rbeta"]), 0.0)
    scores = (h @ params["rw2"] + params["rb2"]).squeeze(-1)
    w = jax.nn.softmax(scores, axis=0)
    base = w[None, :] @ node_embeddings
    temb = params["topic_embedding"][topic_ids]
    combined = jnp.concatenate([base, temb], axis=1)
    w1 = jnp.concatenate([params["tw1e"], params["tw1t"]], axis=0)
    h2 = jnp.maximum(ln(combined @ w1 + params["tb1"], params["tg"], params["tbeta"]), 0.0)
    cond = h2 @ params["tw2"] + params["tb2"]
    return w, cond


if __name__ == "__main__":
    # small shapes consistent with the module (hidden_dim / topic_embedding_dim defaults)
    embedding_dim = 128
    hidden_dim = 256
    topic_embedding_dim = 64
    num_topics = 16
    feature_dim = 32
    batch = 2

    key = jax.random.PRNGKey(0)
    k_ne, k_pf, k_par = jax.random.split(key, 3)

    params = init_params(k_par, embedding_dim, hidden_dim, topic_embedding_dim, num_topics)
    topic_ids = jnp.array([3], dtype=jnp.int32)  # (1,) so concat([base, topic_emb], dim=1) is valid
    # paper features (unused: placeholder generator has no forward())
    paper_features = jax.random.normal(k_pf, (batch, 256, feature_dim), jnp.float32)

    # num_nodes=256 exercises the multi-tile online-softmax carry (tile_n=128 -> 2 tiles);
    # num_nodes=200 exercises the pad-to-128 + mask path (N % 128 != 0).
    for num_nodes in (256, 200):
        node_embeddings = jax.random.normal(
            jax.random.fold_in(k_ne, num_nodes), (num_nodes, embedding_dim), jnp.float32)

        relevance_weights, condition = topic_conditioned_forward(
            node_embeddings, topic_ids, params, tile_n=128)
        jax.block_until_ready((relevance_weights, condition))

        # sanity check against pure-JAX f32 reference (tolerances account for bf16 MXU operands)
        w_ref, c_ref = reference_forward(node_embeddings, topic_ids, params)
        assert relevance_weights.shape == (num_nodes,)
        assert condition.shape == (1, embedding_dim)
        assert np.allclose(np.asarray(relevance_weights), np.asarray(w_ref), atol=5e-4), \
            np.max(np.abs(np.asarray(relevance_weights) - np.asarray(w_ref)))
        assert np.allclose(np.asarray(condition), np.asarray(c_ref), atol=1e-2, rtol=1e-2), \
            np.max(np.abs(np.asarray(condition) - np.asarray(c_ref)))

    print("KERNEL_OK")
</pallas_src>

<mosaic_0001>
module attributes {stable_mosaic.version = 11 : i64} {
  func.func @_condition_kernel(%arg0: i32, %arg1: memref<1xi32, #tpu.memory_space<smem>>, %arg2: memref<128x128xf32, #tpu.memory_space<vmem>>, %arg3: memref<128x256xbf16, #tpu.memory_space<vmem>>, %arg4: memref<1x256xf32, #tpu.memory_space<vmem>>, %arg5: memref<1x256xf32, #tpu.memory_space<vmem>>, %arg6: memref<1x256xf32, #tpu.memory_space<vmem>>, %arg7: memref<1x256xf32, #tpu.memory_space<vmem>>, %arg8: memref<1x1xf32, #tpu.memory_space<vmem>>, %arg9: memref<1x1x64xf32, #tpu.memory_space<vmem>>, %arg10: memref<128x256xf32, #tpu.memory_space<vmem>>, %arg11: memref<64x256xf32, #tpu.memory_space<vmem>>, %arg12: memref<1x256xf32, #tpu.memory_space<vmem>>, %arg13: memref<1x256xf32, #tpu.memory_space<vmem>>, %arg14: memref<1x256xf32, #tpu.memory_space<vmem>>, %arg15: memref<256x128xf32, #tpu.memory_space<vmem>>, %arg16: memref<1x128xf32, #tpu.memory_space<vmem>>, %arg17: memref<1x1x128xf32, #tpu.memory_space<vmem>>, %arg18: memref<1x1xf32, #tpu.memory_space<vmem>>, %arg19: memref<1x128xf32, #tpu.memory_space<vmem>>, %arg20: memref<1x1xf32, #tpu.memory_space<vmem>>, %arg21: memref<1x1xf32, #tpu.memory_space<vmem>>, %arg22: memref<1x128xf32, #tpu.memory_space<vmem>>) attributes {dimension_semantics = [#tpu.dimension_semantics<arbitrary>], iteration_bounds = array<i64: 2>, scalar_prefetch = 1 : i64, scratch_operands = 3 : i64, tpu.core_type = #tpu.core_type<tc>, window_params = [{transform_indices = @transform_0, window_bounds = array<i64: 128, 128>}, {pipeline_mode = #tpu.pipeline_mode<synchronous>, transform_indices = @transform_1, window_bounds = array<i64: 128, 256>}, {pipeline_mode = #tpu.pipeline_mode<synchronous>, transform_indices = @transform_2, window_bounds = array<i64: 1, 256>}, {pipeline_mode = #tpu.pipeline_mode<synchronous>, transform_indices = @transform_3, window_bounds = array<i64: 1, 256>}, {pipeline_mode = #tpu.pipeline_mode<synchronous>, transform_indices = @transform_4, window_bounds = array<i64: 1, 256>}, {pipeline_mode = #tpu.pipeline_mode<synchronous>, transform_indices = @transform_5, window_bounds = array<i64: 1, 256>}, {pipeline_mode = #tpu.pipeline_mode<synchronous>, transform_indices = @transform_6, window_bounds = array<i64: 1, 1>}, {transform_indices = @transform_7, window_bounds = array<i64: 1, 1, 64>}, {pipeline_mode = #tpu.pipeline_mode<synchronous>, transform_indices = @transform_8, window_bounds = array<i64: 128, 256>}, {pipeline_mode = #tpu.pipeline_mode<synchronous>, transform_indices = @transform_9, window_bounds = array<i64: 64, 256>}, {pipeline_mode = #tpu.pipeline_mode<synchronous>, transform_indices = @transform_10, window_bounds = array<i64: 1, 256>}, {pipeline_mode = #tpu.pipeline_mode<synchronous>, transform_indices = @transform_11, window_bounds = array<i64: 1, 256>}, {pipeline_mode = #tpu.pipeline_mode<synchronous>, transform_indices = @transform_12, window_bounds = array<i64: 1, 256>}, {pipeline_mode = #tpu.pipeline_mode<synchronous>, transform_indices = @transform_13, window_bounds = array<i64: 256, 128>}, {pipeline_mode = #tpu.pipeline_mode<synchronous>, transform_indices = @transform_14, window_bounds = array<i64: 1, 128>}, {transform_indices = @transform_15, window_bounds = array<i64: 1, 1, 128>}, {pipeline_mode = #tpu.pipeline_mode<synchronous>, transform_indices = @transform_16, window_bounds = array<i64: 1, 1>}, {pipeline_mode = #tpu.pipeline_mode<synchronous>, transform_indices = @transform_17, window_bounds = array<i64: 1, 128>}]} {
    %c0_i32 = arith.constant 0 : i32
    %0 = arith.cmpi eq, %arg0, %c0_i32 : i32
    %1 = arith.extui %0 : i1 to i32
    %c0_i32_0 = arith.constant 0 : i32
    %2 = arith.cmpi ne, %1, %c0_i32_0 : i32
    scf.if %2 {
      %cst_41 = arith.constant 0xFF800000 : f32
      %69 = vector.broadcast %cst_41 : f32 to vector<1x1xf32>
      %c0_42 = arith.constant 0 : index
      %c0_43 = arith.constant 0 : index
      %70 = vector.load %arg20[%c0_42, %c0_43] : memref<1x1xf32, #tpu.memory_space<vmem>>, vector<1x1xf32>
      tpu.vector_store %arg20[%c0_42, %c0_43], %69 {strides = array<i32>} : memref<1x1xf32, #tpu.memory_space<vmem>>, vector<1x1xf32>,
      %cst_44 = arith.constant 0.000000e+00 : f32
      %71 = vector.broadcast %cst_44 : f32 to vector<1x1xf32>
      %c0_45 = arith.constant 0 : index
      %c0_46 = arith.constant 0 : index
      %72 = vector.load %arg21[%c0_45, %c0_46] : memref<1x1xf32, #tpu.memory_space<vmem>>, vector<1x1xf32>
      tpu.vector_store %arg21[%c0_45, %c0_46], %71 {strides = array<i32>} : memref<1x1xf32, #tpu.memory_space<vmem>>, vector<1x1xf32>,
      %cst_47 = arith.constant 0.000000e+00 : f32
      %73 = vector.broadcast %cst_47 : f32 to vector<1x128xf32>
      %c0_48 = arith.constant 0 : index
      %c0_49 = arith.constant 0 : index
      %74 = vector.load %arg22[%c0_48, %c0_49] : memref<1x128xf32, #tpu.memory_space<vmem>>, vector<1x128xf32>
      tpu.vector_store %arg22[%c0_48, %c0_49], %73 {strides = array<i32>} : memref<1x128xf32, #tpu.memory_space<vmem>>, vector<1x128xf32>,
    } else {
    }
    %c0 = arith.constant 0 : index
    %c0_1 = arith.constant 0 : index
    %3 = vector.load %arg2[%c0, %c0_1] : memref<128x128xf32, #tpu.memory_space<vmem>>, vector<128x128xf32>
    %4 = arith.truncf %3 : vector<128x128xf32> to vector<128x128xbf16>
    %c0_2 = arith.constant 0 : index
    %c0_3 = arith.constant 0 : index
    %5 = vector.load %arg3[%c0_2, %c0_3] : memref<128x256xbf16, #tpu.memory_space<vmem>>, vector<128x256xbf16>
    %cst = arith.constant dense<0.000000e+00> : vector<128x256xf32>
    %6 = tpu.matmul %4, %5, %cst {dimension_numbers = #tpu.dot_dimension_numbers<[1], [0], [0], [1], [0, 0, 1, 1], [], []>} : vector<128x128xbf16>, vector<128x256xbf16>, vector<128x256xf32> -> vector<128x256xf32>
    %c0_4 = arith.constant 0 : index
    %c0_5 = arith.constant 0 : index
    %7 = vector.load %arg4[%c0_4, %c0_5] : memref<1x256xf32, #tpu.memory_space<vmem>>, vector<1x256xf32>
    %8 = vector.broadcast %7 : vector<1x256xf32> to vector<128x256xf32>
    %9 = arith.addf %6, %8 : vector<128x256xf32>
    %cst_6 = arith.constant 1.000000e+00 : f32
    %10 = vector.broadcast %cst_6 : f32 to vector<256x1xf32>
    %cst_7 = arith.constant dense<0.000000e+00> : vector<128x1xf32>
    %11 = tpu.matmul %9, %10, %cst_7 {dimension_numbers = #tpu.dot_dimension_numbers<[1], [0], [0], [1], [0, 0, 1, 1], [], []>} : vector<128x256xf32>, vector<256x1xf32>, vector<128x1xf32> -> vector<128x1xf32>
    %cst_8 = arith.constant 3.906250e-03 : f32
    %12 = vector.broadcast %cst_8 : f32 to vector<128x1xf32>
    %13 = arith.mulf %11, %12 : vector<128x1xf32>
    %14 = arith.mulf %9, %9 : vector<128x256xf32>
    %cst_9 = arith.constant dense<0.000000e+00> : vector<128x1xf32>
    %15 = tpu.matmul %14, %10, %cst_9 {dimension_numbers = #tpu.dot_dimension_numbers<[1], [0], [0], [1], [0, 0, 1, 1], [], []>} : vector<128x256xf32>, vector<256x1xf32>, vector<128x1xf32> -> vector<128x1xf32>
    %cst_10 = arith.constant 3.906250e-03 : f32
    %16 = vector.broadcast %cst_10 : f32 to vector<128x1xf32>
    %17 = arith.mulf %15, %16 : vector<128x1xf32>
    %18 = arith.mulf %13, %13 : vector<128x1xf32>
    %19 = arith.subf %17, %18 : vector<128x1xf32>
    %20 = vector.broadcast %13 : vector<128x1xf32> to vector<128x256xf32>
    %21 = arith.subf %9, %20 : vector<128x256xf32>
    %cst_11 = arith.constant 9.99999974E-6 : f32
    %22 = vector.broadcast %cst_11 : f32 to vector<128x1xf32>
    %23 = arith.addf %19, %22 : vector<128x1xf32>
    %24 = math.rsqrt %23 : vector<128x1xf32>
    %25 = vector.broadcast %24 : vector<128x1xf32> to vector<128x256xf32>
    %26 = arith.mulf %21, %25 : vector<128x256xf32>
    %c0_12 = arith.constant 0 : index
    %c0_13 = arith.constant 0 : index
    %27 = vector.load %arg5[%c0_12, %c0_13] : memref<1x256xf32, #tpu.memory_space<vmem>>, vector<1x256xf32>
    %28 = vector.broadcast %27 : vector<1x256xf32> to vector<128x256xf32>
    %29 = arith.mulf %26, %28 : vector<128x256xf32>
    %c0_14 = arith.constant 0 : index
    %c0_15 = arith.constant 0 : index
    %30 = vector.load %arg6[%c0_14, %c0_15] : memref<1x256xf32, #tpu.memory_space<vmem>>, vector<1x256xf32>
    %31 = vector.broadcast %30 : vector<1x256xf32> to vector<128x256xf32>
    %32 = arith.addf %29, %31 : vector<128x256xf32>
    %cst_16 = arith.constant 0.000000e+00 : f32
    %33 = vector.broadcast %cst_16 : f32 to vector<128x256xf32>
    %34 = arith.maximumf %32, %33 : vector<128x256xf32>
    %c0_17 = arith.constant 0 : index
    %c0_18 = arith.constant 0 : index
    %35 = vector.load %arg7[%c0_17, %c0_18] : memref<1x256xf32, #tpu.memory_space<vmem>>, vector<1x256xf32>
    %cst_19 = arith.constant dense<0.000000e+00> : vector<1x128xf32>
    %36 = tpu.matmul %35, %34, %cst_19 {dimension_numbers = #tpu.dot_dimension_numbers<[1], [1], [0], [0], [0, 0, 1, 0], [], []>} : vector<1x256xf32>, vector<128x256xf32>, vector<1x128xf32> -> vector<1x128xf32>
    %c0_20 = arith.constant 0 : index
    %c0_21 = arith.constant 0 : index
    %37 = vector.load %arg8[%c0_20, %c0_21] : memref<1x1xf32, #tpu.memory_space<vmem>>, vector<1x1xf32>
    %38 = vector.broadcast %37 : vector<1x1xf32> to vector<1x128xf32>
    %39 = arith.addf %36, %38 : vector<1x128xf32>
    %c0_22 = arith.constant 0 : index
    %c0_23 = arith.constant 0 : index
    %c0_24 = arith.constant 0 : index
    %40 = vector.load %arg17[%c0_22, %c0_23, %c0_24] : memref<1x1x128xf32, #tpu.memory_space<vmem>>, vector<1x1x128xf32>
    %41 = vector.shape_cast %40 : vector<1x1x128xf32> to vector<1x128xf32>
    %42 = vector.shape_cast %39 : vector<1x128xf32> to vector<1x1x128xf32>
    tpu.vector_store %arg17[%c0_22, %c0_23, %c0_24], %42 {strides = array<i32>} : memref<1x1x128xf32, #tpu.memory_space<vmem>>, vector<1x1x128xf32>,
    %c0_25 = arith.constant 0 : index
    %c0_26 = arith.constant 0 : index
    %43 = vector.load %arg20[%c0_25, %c0_26] : memref<1x1xf32, #tpu.memory_space<vmem>>, vector<1x1xf32>
    %cst_27 = arith.constant dense<0xFF800000> : vector<1xf32>
    %44 = vector.multi_reduction <maximumf>, %39, %cst_27 [1] : vector<1x128xf32> to vector<1xf32>
    %45 = vector.shape_cast %44 : vector<1xf32> to vector<1x1xf32>
    %46 = arith.maximumf %43, %45 : vector<1x1xf32>
    %47 = arith.subf %43, %46 : vector<1x1xf32>
    %48 = math.exp %47 : vector<1x1xf32>
    %49 = vector.broadcast %46 : vector<1x1xf32> to vector<1x128xf32>
    %50 = arith.subf %39, %49 : vector<1x128xf32>
    %51 = math.exp %50 : vector<1x128xf32>
    %c0_28 = arith.constant 0 : index
    %c0_29 = arith.constant 0 : index
    %52 = vector.load %arg21[%c0_28, %c0_29] : memref<1x1xf32, #tpu.memory_space<vmem>>, vector<1x1xf32>
    %53 = arith.mulf %48, %52 : vector<1x1xf32>
    %cst_30 = arith.constant dense<0.000000e+00> : vector<1xf32>
    %54 = vector.multi_reduction <add>, %51, %cst_30 [1] : vector<1x128xf32> to vector<1xf32>
    %55 = vector.shape_cast %54 : vector<1xf32> to vector<1x1xf32>
    %56 = arith.addf %53, %55 : vector<1x1xf32>
    %c0_31 = arith.constant 0 : index
    %c0_32 = arith.constant 0 : index
    %57 = vector.load %arg21[%c0_31, %c0_32] : memref<1x1xf32, #tpu.memory_space<vmem>>, vector<1x1xf32>
    tpu.vector_store %arg21[%c0_31, %c0_32], %56 {strides = array<i32>} : memref<1x1xf32, #tpu.memory_space<vmem>>, vector<1x1xf32>,
    %c0_33 = arith.constant 0 : index
    %c0_34 = arith.constant 0 : index
    %58 = vector.load %arg22[%c0_33, %c0_34] : memref<1x128xf32, #tpu.memory_space<vmem>>, vector<1x128xf32>
    %59 = vector.broadcast %48 : vector<1x1xf32> to vector<1x128xf32>
    %60 = arith.mulf %59, %58 : vector<1x128xf32>
    %61 = arith.truncf %51 : vector<1x128xf32> to vector<1x128xbf16>
    %cst_35 = arith.constant dense<0.000000e+00> : vector<1x128xf32>
    %62 = tpu.matmul %61, %4, %cst_35 {dimension_numbers = #tpu.dot_dimension_numbers<[1], [0], [0], [1], [0, 0, 1, 1], [], []>} : vector<1x128xbf16>, vector<128x128xbf16>, vector<1x128xf32> -> vector<1x128xf32>
    %63 = arith.addf %60, %62 : vector<1x128xf32>
    %c0_36 = arith.constant 0 : index
    %c0_37 = arith.constant 0 : index
    %64 = vector.load %arg22[%c0_36, %c0_37] : memref<1x128xf32, #tpu.memory_space<vmem>>, vector<1x128xf32>
    tpu.vector_store %arg22[%c0_36, %c0_37], %63 {strides = array<i32>} : memref<1x128xf32, #tpu.memory_space<vmem>>, vector<1x128xf32>,
    %c0_38 = arith.constant 0 : index
    %c0_39 = arith.constant 0 : index
    %65 = vector.load %arg20[%c0_38, %c0_39] : memref<1x1xf32, #tpu.memory_space<vmem>>, vector<1x1xf32>
    tpu.vector_store %arg20[%c0_38, %c0_39], %46 {strides = array<i32>} : memref<1x1xf32, #tpu.memory_space<vmem>>, vector<1x1xf32>,
    %c1_i32 = arith.constant 1 : i32
    %66 = arith.cmpi eq, %arg0, %c1_i32 : i32
    %67 = arith.extui %66 : i1 to i32
    %c0_i32_40 = arith.constant 0 : i32
    %68 = arith.cmpi ne, %67, %c0_i32_40 : i32
    scf.if %68 {
      %c0_41 = arith.constant 0 : index
      %c0_42 = arith.constant 0 : index
      %69 = vector.load %arg21[%c0_41, %c0_42] : memref<1x1xf32, #tpu.memory_space<vmem>>, vector<1x1xf32>
      %cst_43 = arith.constant 1.000000e+00 : f32
      %70 = vector.broadcast %cst_43 : f32 to vector<1x1xf32>
      %71 = arith.divf %70, %69 : vector<1x1xf32>
      %c0_44 = arith.constant 0 : index
      %c0_45 = arith.constant 0 : index
      %72 = vector.load %arg20[%c0_44, %c0_45] : memref<1x1xf32, #tpu.memory_space<vmem>>, vector<1x1xf32>
      %73 = math.log %69 : vector<1x1xf32>
      %74 = arith.addf %72, %73 : vector<1x1xf32>
      %c0_46 = arith.constant 0 : index
      %c0_47 = arith.constant 0 : index
      %75 = vector.load %arg18[%c0_46, %c0_47] : memref<1x1xf32, #tpu.memory_space<vmem>>, vector<1x1xf32>
      tpu.vector_store %arg18[%c0_46, %c0_47], %74 {strides = array<i32>} : memref<1x1xf32, #tpu.memory_space<vmem>>, vector<1x1xf32>,
      %c0_48 = arith.constant 0 : index
      %c0_49 = arith.constant 0 : index
      %76 = vector.load %arg22[%c0_48, %c0_49] : memref<1x128xf32, #tpu.memory_space<vmem>>, vector<1x128xf32>
      %77 = vector.broadcast %71 : vector<1x1xf32> to vector<1x128xf32>
      %78 = arith.mulf %76, %77 : vector<1x128xf32>
      %c0_50 = arith.constant 0 : index
      %c0_51 = arith.constant 0 : index
      %c0_52 = arith.constant 0 : index
      %79 = vector.load %arg9[%c0_50, %c0_51, %c0_52] : memref<1x1x64xf32, #tpu.memory_space<vmem>>, vector<1x1x64xf32>
      %80 = vector.shape_cast %79 : vector<1x1x64xf32> to vector<1x64xf32>
      %c0_53 = arith.constant 0 : index
      %c0_54 = arith.constant 0 : index
      %81 = vector.load %arg10[%c0_53, %c0_54] : memref<128x256xf32, #tpu.memory_space<vmem>>, vector<128x256xf32>
      %cst_55 = arith.constant dense<0.000000e+00> : vector<1x256xf32>
      %82 = tpu.matmul %78, %81, %cst_55 {dimension_numbers = #tpu.dot_dimension_numbers<[1], [0], [0], [1], [0, 0, 1, 1], [], []>} : vector<1x128xf32>, vector<128x256xf32>, vector<1x256xf32> -> vector<1x256xf32>
      %c0_56 = arith.constant 0 : index
      %c0_57 = arith.constant 0 : index
      %83 = vector.load %arg11[%c0_56, %c0_57] : memref<64x256xf32, #tpu.memory_space<vmem>>, vector<64x256xf32>
      %cst_58 = arith.constant dense<0.000000e+00> : vector<1x256xf32>
      %84 = tpu.matmul %80, %83, %cst_58 {dimension_numbers = #tpu.dot_dimension_numbers<[1], [0], [0], [1], [0, 0, 1, 1], [], []>} : vector<1x64xf32>, vector<64x256xf32>, vector<1x256xf32> -> vector<1x256xf32>
      %85 = arith.addf %82, %84 : vector<1x256xf32>
      %c0_59 = arith.constant 0 : index
      %c0_60 = arith.constant 0 : index
      %86 = vector.load %arg12[%c0_59, %c0_60] : memref<1x256xf32, #tpu.memory_space<vmem>>, vector<1x256xf32>
      %87 = arith.addf %85, %86 : vector<1x256xf32>
      %cst_61 = arith.constant dense<0.000000e+00> : vector<1xf32>
      %88 = vector.multi_reduction <add>, %87, %cst_61 [1] : vector<1x256xf32> to vector<1xf32>
      %89 = vector.shape_cast %88 : vector<1xf32> to vector<1x1xf32>
      %cst_62 = arith.constant 3.906250e-03 : f32
      %90 = vector.broadcast %cst_62 : f32 to vector<1x1xf32>
      %91 = arith.mulf %89, %90 : vector<1x1xf32>
      %92 = arith.mulf %87, %87 : vector<1x256xf32>
      %cst_63 = arith.constant dense<0.000000e+00> : vector<1xf32>
      %93 = vector.multi_reduction <add>, %92, %cst_63 [1] : vector<1x256xf32> to vector<1xf32>
      %94 = vector.shape_cast %93 : vector<1xf32> to vector<1x1xf32>
      %cst_64 = arith.constant 3.906250e-03 : f32
      %95 = vector.broadcast %cst_64 : f32 to vector<1x1xf32>
      %96 = arith.mulf %94, %95 : vector<1x1xf32>
      %97 = arith.mulf %91, %91 : vector<1x1xf32>
      %98 = arith.subf %96, %97 : vector<1x1xf32>
      %99 = vector.broadcast %91 : vector<1x1xf32> to vector<1x256xf32>
      %100 = arith.subf %87, %99 : vector<1x256xf32>
      %cst_65 = arith.constant 9.99999974E-6 : f32
      %101 = vector.broadcast %cst_65 : f32 to vector<1x1xf32>
      %102 = arith.addf %98, %101 : vector<1x1xf32>
      %103 = math.rsqrt %102 : vector<1x1xf32>
      %104 = vector.broadcast %103 : vector<1x1xf32> to vector<1x256xf32>
      %105 = arith.mulf %100, %104 : vector<1x256xf32>
      %c0_66 = arith.constant 0 : index
      %c0_67 = arith.constant 0 : index
      %106 = vector.load %arg13[%c0_66, %c0_67] : memref<1x256xf32, #tpu.memory_space<vmem>>, vector<1x256xf32>
      %107 = arith.mulf %105, %106 : vector<1x256xf32>
      %c0_68 = arith.constant 0 : index
      %c0_69 = arith.constant 0 : index
      %108 = vector.load %arg14[%c0_68, %c0_69] : memref<1x256xf32, #tpu.memory_space<vmem>>, vector<1x256xf32>
      %109 = arith.addf %107, %108 : vector<1x256xf32>
      %cst_70 = arith.constant 0.000000e+00 : f32
      %110 = vector.broadcast %cst_70 : f32 to vector<1x256xf32>
      %111 = arith.maximumf %109, %110 : vector<1x256xf32>
      %c0_71 = arith.constant 0 : index
      %c0_72 = arith.constant 0 : index
      %112 = vector.load %arg15[%c0_71, %c0_72] : memref<256x128xf32, #tpu.memory_space<vmem>>, vector<256x128xf32>
      %cst_73 = arith.constant dense<0.000000e+00> : vector<1x128xf32>
      %113 = tpu.matmul %111, %112, %cst_73 {dimension_numbers = #tpu.dot_dimension_numbers<[1], [0], [0], [1], [0, 0, 1, 1], [], []>} : vector<1x256xf32>, vector<256x128xf32>, vector<1x128xf32> -> vector<1x128xf32>
      %c0_74 = arith.constant 0 : index
      %c0_75 = arith.constant 0 : index
      %114 = vector.load %arg16[%c0_74, %c0_75] : memref<1x128xf32, #tpu.memory_space<vmem>>, vector<1x128xf32>
      %115 = arith.addf %113, %114 : vector<1x128xf32>
      %c0_76 = arith.constant 0 : index
      %c0_77 = arith.constant 0 : index
      %116 = vector.load %arg19[%c0_76, %c0_77] : memref<1x128xf32, #tpu.memory_space<vmem>>, vector<1x128xf32>
      tpu.vector_store %arg19[%c0_76, %c0_77], %115 {strides = array<i32>} : memref<1x128xf32, #tpu.memory_space<vmem>>, vector<1x128xf32>,
    } else {
    }
    return
  }
  func.func @transform_0(%arg0: i32, %arg1: memref<1xi32, #tpu.memory_space<smem>>) -> (i32, i32) {
    %c0_i32 = arith.constant 0 : i32
    %c0_i32_0 = arith.constant 0 : i32
    return %arg0, %c0_i32 : i32, i32
  }
  func.func @transform_1(%arg0: i32, %arg1: memref<1xi32, #tpu.memory_space<smem>>) -> (i32, i32) {
    %c0_i32 = arith.constant 0 : i32
    %c0_i32_0 = arith.constant 0 : i32
    %c0_i32_1 = arith.constant 0 : i32
    return %c0_i32, %c0_i32_0 : i32, i32
  }
  func.func @transform_2(%arg0: i32, %arg1: memref<1xi32, #tpu.memory_space<smem>>) -> (i32, i32) {
    %c0_i32 = arith.constant 0 : i32
    %c0_i32_0 = arith.constant 0 : i32
    %c0_i32_1 = arith.constant 0 : i32
    return %c0_i32, %c0_i32_0 : i32, i32
  }
  func.func @transform_3(%arg0: i32, %arg1: memref<1xi32, #tpu.memory_space<smem>>) -> (i32, i32) {
    %c0_i32 = arith.constant 0 : i32
    %c0_i32_0 = arith.constant 0 : i32
    %c0_i32_1 = arith.constant 0 : i32
    return %c0_i32, %c0_i32_0 : i32, i32
  }
  func.func @transform_4(%arg0: i32, %arg1: memref<1xi32, #tpu.memory_space<smem>>) -> (i32, i32) {
    %c0_i32 = arith.constant 0 : i32
    %c0_i32_0 = arith.constant 0 : i32
    %c0_i32_1 = arith.constant 0 : i32
    return %c0_i32, %c0_i32_0 : i32, i32
  }
  func.func @transform_5(%arg0: i32, %arg1: memref<1xi32, #tpu.memory_space<smem>>) -> (i32, i32) {
    %c0_i32 = arith.constant 0 : i32
    %c0_i32_0 = arith.constant 0 : i32
    %c0_i32_1 = arith.constant 0 : i32
    return %c0_i32, %c0_i32_0 : i32, i32
  }
  func.func @transform_6(%arg0: i32, %arg1: memref<1xi32, #tpu.memory_space<smem>>) -> (i32, i32) {
    %c0_i32 = arith.constant 0 : i32
    %c0_i32_0 = arith.constant 0 : i32
    %c0_i32_1 = arith.constant 0 : i32
    return %c0_i32, %c0_i32_0 : i32, i32
  }
  func.func @transform_7(%arg0: i32, %arg1: memref<1xi32, #tpu.memory_space<smem>>) -> (i32, i32, i32) {
    %c0 = arith.constant 0 : index
    %0 = memref.load %arg1[%c0] : memref<1xi32, #tpu.memory_space<smem>>
    %c0_i32 = arith.constant 0 : i32
    %c0_i32_0 = arith.constant 0 : i32
    %c0_i32_1 = arith.constant 0 : i32
    return %0, %c0_i32, %c0_i32_0 : i32, i32, i32
  }
  func.func @transform_8(%arg0: i32, %arg1: memref<1xi32, #tpu.memory_space<smem>>) -> (i32, i32) {
    %c0_i32 = arith.constant 0 : i32
    %c0_i32_0 = arith.constant 0 : i32
    %c0_i32_1 = arith.constant 0 : i32
    return %c0_i32, %c0_i32_0 : i32, i32
  }
  func.func @transform_9(%arg0: i32, %arg1: memref<1xi32, #tpu.memory_space<smem>>) -> (i32, i32) {
    %c0_i32 = arith.constant 0 : i32
    %c0_i32_0 = arith.constant 0 : i32
    %c0_i32_1 = arith.constant 0 : i32
    return %c0_i32, %c0_i32_0 : i32, i32
  }
  func.func @transform_10(%arg0: i32, %arg1: memref<1xi32, #tpu.memory_space<smem>>) -> (i32, i32) {
    %c0_i32 = arith.constant 0 : i32
    %c0_i32_0 = arith.constant 0 : i32
    %c0_i32_1 = arith.constant 0 : i32
    return %c0_i32, %c0_i32_0 : i32, i32
  }
  func.func @transform_11(%arg0: i32, %arg1: memref<1xi32, #tpu.memory_space<smem>>) -> (i32, i32) {
    %c0_i32 = arith.constant 0 : i32
    %c0_i32_0 = arith.constant 0 : i32
    %c0_i32_1 = arith.constant 0 : i32
    return %c0_i32, %c0_i32_0 : i32, i32
  }
  func.func @transform_12(%arg0: i32, %arg1: memref<1xi32, #tpu.memory_space<smem>>) -> (i32, i32) {
    %c0_i32 = arith.constant 0 : i32
    %c0_i32_0 = arith.constant 0 : i32
    %c0_i32_1 = arith.constant 0 : i32
    return %c0_i32, %c0_i32_0 : i32, i32
  }
  func.func @transform_13(%arg0: i32, %arg1: memref<1xi32, #tpu.memory_space<smem>>) -> (i32, i32) {
    %c0_i32 = arith.constant 0 : i32
    %c0_i32_0 = arith.constant 0 : i32
    %c0_i32_1 = arith.constant 0 : i32
    return %c0_i32, %c0_i32_0 : i32, i32
  }
  func.func @transform_14(%arg0: i32, %arg1: memref<1xi32, #tpu.memory_space<smem>>) -> (i32, i32) {
    %c0_i32 = arith.constant 0 : i32
    %c0_i32_0 = arith.constant 0 : i32
    %c0_i32_1 = arith.constant 0 : i32
    return %c0_i32, %c0_i32_0 : i32, i32
  }
  func.func @transform_15(%arg0: i32, %arg1: memref<1xi32, #tpu.memory_space<smem>>) -> (i32, i32, i32) {
    %c0_i32 = arith.constant 0 : i32
    %c0_i32_0 = arith.constant 0 : i32
    %c0_i32_1 = arith.constant 0 : i32
    return %arg0, %c0_i32, %c0_i32_0 : i32, i32, i32
  }
  func.func @transform_16(%arg0: i32, %arg1: memref<1xi32, #tpu.memory_space<smem>>) -> (i32, i32) {
    %c0_i32 = arith.constant 0 : i32
    %c0_i32_0 = arith.constant 0 : i32
    %c0_i32_1 = arith.constant 0 : i32
    return %c0_i32, %c0_i32_0 : i32, i32
  }
  func.func @transform_17(%arg0: i32, %arg1: memref<1xi32, #tpu.memory_space<smem>>) -> (i32, i32) {
    %c0_i32 = arith.constant 0 : i32
    %c0_i32_0 = arith.constant 0 : i32
    %c0_i32_1 = arith.constant 0 : i32
    return %c0_i32, %c0_i32_0 : i32, i32
  }
}

</mosaic_0001>

<llo_original>
// kernel: topic_conditioned_forward.1
$region0: #{topic_conditioned_forward.1}
  #allocation0 [shape = 'u32[]', space=smem, size = 0x4, offset = 0x4, fixed_abs, tag = 'smem constant byte address 0x4 - core index']
  #allocation1 [shape = 'u32[144,128]{1,0:T(1,128)}', space=vmem, size = 0x12000, scoped, tag = 'internal scratch']
  #allocation2 [shape = 'f32[1,1]{1,0:T(1,128)}', space=vmem, size = 0x200, scoped, tag = 'scratch operand']
  #allocation3 [shape = 'f32[1,1]{1,0:T(1,128)}', space=vmem, size = 0x200, scoped, tag = 'scratch operand']
  #allocation4 [shape = 'f32[1,128]{1,0:T(1,128)}', space=vmem, size = 0x200, scoped, tag = 'scratch operand']
  #allocation5 [shape = 's32[1]{0}', space=sflag, size = 0x4, scoped, tag = 'scoped memory for topic_conditioned_forward.1']
  #allocation6 [shape = 's32[1]{0:T(128)S(6)}', space=smem, size = 0x200, scoped, tag = 'prefetched SMEM operand 0']
  #allocation7 [shape = 'f32[1,1]{1,0:T(1,128)S(1)}', space=vmem, size = 0x200, scoped, tag = 'scoped memory for topic_conditioned_forward.1']
  %s0 = inlined_call_operand.<no memory space> [shape: s32[1], index: 0, kind: input, shape index: {}]
  %s1 = inlined_call_operand.vmem [shape: f32[256,128], index: 1, kind: input, shape index: {}]
  %s2 = inlined_call_operand.vmem [shape: bf16[128,256], index: 2, kind: input, shape index: {}]
  %s3 = inlined_call_operand.vmem [shape: f32[1,256], index: 3, kind: input, shape index: {}]
  %s4 = inlined_call_operand.vmem [shape: f32[1,256], index: 4, kind: input, shape index: {}]
  %s5 = inlined_call_operand.vmem [shape: f32[1,256], index: 5, kind: input, shape index: {}]
  %s6 = inlined_call_operand.vmem [shape: f32[1,256], index: 6, kind: input, shape index: {}]
  %s7 = inlined_call_operand.<no memory space> [shape: f32[1,1], index: 7, kind: input, shape index: {}]
  %s8 = inlined_call_operand.vmem [shape: f32[16,1,64], index: 8, kind: input, shape index: {}]
  %s9 = inlined_call_operand.hbm [shape: f32[128,256], index: 9, kind: input, shape index: {}]
  %s10 = inlined_call_operand.vmem [shape: f32[64,256], index: 10, kind: input, shape index: {}]
  %s11 = inlined_call_operand.vmem [shape: f32[1,256], index: 11, kind: input, shape index: {}]
  %s12 = inlined_call_operand.vmem [shape: f32[1,256], index: 12, kind: input, shape index: {}]
  %s13 = inlined_call_operand.vmem [shape: f32[1,256], index: 13, kind: input, shape index: {}]
  %s14 = inlined_call_operand.hbm [shape: f32[256,128], index: 14, kind: input, shape index: {}]
  %s15 = inlined_call_operand.vmem [shape: f32[1,128], index: 15, kind: input, shape index: {}]
  %s16 = inlined_call_operand.vmem [shape: f32[2,1,128], index: 16, kind: output, shape index: {0}]
  %s17 = inlined_call_operand.hbm [shape: f32[1,1], index: 17, kind: output, shape index: {1}]
  %s18 = inlined_call_operand.hbm [shape: f32[1,128], index: 18, kind: output, shape index: {2}]
  %19 = xla_tuple %s16, %s17, %s18
  %s20 = sld [smem:[#allocation0]]
  $region125: #{topic_conditioned_forward.1} parent=0
    _
  %s22 = ssub.s32 1, %s20
  %s23 = scalar_select 0, %s22, %s20
  %24 = sst [smem:[#allocation6]] %s0
  %v25 = vstv %s7
  %26 = vst [vmem:[#allocation7] sm:$0x1] %v25
  $region1: #{topic_conditioned_forward.1} parent=0
    #allocation8 [shape = 'u8[131072]{0}', space=vmem, size = 0x20000, scoped, tag = 'input window, operand 9, single buffered']
    #allocation9 [shape = 's32[2]{0}', space=sflag, size = 0x8, scoped, tag = 'scoped memory for topic_conditioned_forward.1']
    #allocation10 [shape = 's32[2]{0}', space=sflag, size = 0x8, scoped, tag = 'scoped memory for topic_conditioned_forward.1']
    #allocation11 [shape = 'u8[131072]{0}', space=vmem, size = 0x20000, scoped, tag = 'input window, operand 14, single buffered']
    #allocation12 [shape = 's32[1]{0}', space=sflag, size = 0x4, scoped, tag = 'scoped memory for topic_conditioned_forward.1']
    #allocation13 [shape = 'u8[512]{0}', space=vmem, size = 0x400, scoped, tag = 'output window, operand 1, single buffered']
    #allocation14 [shape = 'u8[512]{0}', space=vmem, size = 0x400, scoped, tag = 'output window, operand 2, single buffered']
    #allocation15 [shape = 's32[1]{0}', space=sflag, size = 0x4, scoped, tag = 'scoped memory for topic_conditioned_forward.1']
    %27 = vsyncpa [#allocation9], 0
    %28 = vsyncpa [#allocation12], 0
    %29 = vsyncpa [#allocation10], 0
    %30 = vsyncpa [#allocation15], 0
    loop: start=0, step=1, limit=4
    $region2: #{topic_conditioned_forward.1} parent=1 // loop_pre_header
      _
    $region3: #{topic_conditioned_forward.1} parent=1 // loop_header
      %s32 = sphi 0, %s36
      %p33 = scmp.ge.s32.totalorder %s32, 4
      %s42 = sphi 0, %s44
      %s45 = sphi 0, %s42
      %s46 = sphi 0, %s45
      %s62 = sphi 0, %s46
      %s66 = sphi 0, %s66
      %s68 = sphi 0, %s66
      %s69 = sphi 0, %s68
      %s83 = sphi 0, %s69
      %s87 = sphi 0, %s87
      %s89 = sphi 0, %s87
      %s90 = sphi 0, %s89
      %s104 = sphi 0, %s90
      %s108 = sphi 0, %s108
      %s110 = sphi 0, %s108
      %s111 = sphi 0, %s110
      %s125 = sphi 0, %s111
      %s129 = sphi 0, %s129
      %s131 = sphi 0, %s129
      %s132 = sphi 0, %s131
      %s146 = sphi 0, %s132
      %s150 = sphi 0, %s150
      %s152 = sphi 0, %s150
      %s153 = sphi 0, %s152
      %s167 = sphi 0, %s153
      %s171 = sphi 0, %s171
      %s173 = sphi 0, %s171
      %s174 = sphi 0, %s173
      %s188 = sphi 0, %s174
      %s196 = sphi 0, %s198
      %s199 = sphi 0, %s196
      %s200 = sphi 0, %s199
      %s216 = sphi 0, %s200
      %s220 = sphi 0, %s220
      %s222 = sphi 0, %s220
      %s223 = sphi 0, %s222
      %s237 = sphi 0, %s223
      %s241 = sphi 0, %s241
      %s243 = sphi 0, %s241
      %s244 = sphi 0, %s243
      %s258 = sphi 0, %s244
      %s262 = sphi 0, %s262
      %s264 = sphi 0, %s262
      %s265 = sphi 0, %s264
      %s279 = sphi 0, %s265
      %s283 = sphi 0, %s283
      %s285 = sphi 0, %s283
      %s286 = sphi 0, %s285
      %s300 = sphi 0, %s286
      %s304 = sphi 0, %s304
      %s306 = sphi 0, %s304
      %s307 = sphi 0, %s306
      %s321 = sphi 0, %s307
      %s325 = sphi 0, %s325
      %s327 = sphi 0, %s325
      %s328 = sphi 0, %s327
      %s342 = sphi 0, %s328
      %s346 = sphi 0, %s346
      %s348 = sphi 0, %s346
      %s349 = sphi 0, %s348
      %s363 = sphi 0, %s349
      %s369 = sphi 0, %s371
      %s372 = sphi 0, %s369
      %s373 = sphi 0, %s372
      %s389 = sphi 0, %s373
      %s393 = sphi 0, %s393
      %s395 = sphi 0, %s393
      %s396 = sphi 0, %s395
      %s410 = sphi 0, %s396
      %s414 = sphi 0, %s414
      %s416 = sphi 0, %s414
      %s417 = sphi 0, %s416
      %s431 = sphi 0, %s417
    $region4: #{topic_conditioned_forward.1} parent=1 // loop_header_branch
      %35 = sbr.rel (%p33) target = $region8
    $region5: #{topic_conditioned_forward.1} parent=1 // loop_body
      %s37 = ssub.s32 %s32, 1
      %s38 = ssub.s32 %s32, 2
      %s39 = sadd.s32 %s32, 1
      %s40 = ssub.s32 %s32, %s39
      %p41 = scmp.eq.s32.totalorder %s40, 0
      %s43 = sadd.s32 %s42, 1
      %s44 = scalar_select %p41, %s42, %s43
      %p47 = pneg %p41
      %p48 = scmp.eq.s32.totalorder %s32, 1
      %p49 = por %p47, %p48
      %p50 = scmp.ne.s32.totalorder %s42, %s45
      %p51 = scmp.eq.s32.totalorder %s32, 0
      %p52 = por %p50, %p51
      %p53 = scmp.ne.s32.totalorder %s42, %s45
      %p54 = scmp.eq.s32.totalorder %s37, 1
      %p55 = por %p53, %p54
      %p56 = scmp.ne.s32.totalorder %s45, %s46
      %p57 = scmp.eq.s32.totalorder %s37, 0
      %p58 = por %p56, %p57
      %p59 = scmp.ne.s32.totalorder %s45, %s46
      %p60 = scmp.eq.s32.totalorder %s38, 1
      %p61 = por %p59, %p60
      %p63 = scmp.ne.s32.totalorder %s46, %s62
      %p64 = scmp.eq.s32.totalorder %s38, 0
      %p65 = por %p63, %p64
      %s67 = sadd.s32 %s66, 1
      %p70 = scmp.eq.s32.totalorder %s32, 1
      %p71 = scmp.ne.s32.totalorder %s66, %s68
      %p72 = scmp.eq.s32.totalorder %s32, 0
      %p73 = por %p71, %p72
      %p74 = scmp.ne.s32.totalorder %s66, %s68
      %p75 = scmp.eq.s32.totalorder %s37, 1
      %p76 = por %p74, %p75
      %p77 = scmp.ne.s32.totalorder %s68, %s69
      %p78 = scmp.eq.s32.totalorder %s37, 0
      %p79 = por %p77, %p78
      %p80 = scmp.ne.s32.totalorder %s68, %s69
      %p81 = scmp.eq.s32.totalorder %s38, 1
      %p82 = por %p80, %p81
      %p84 = scmp.ne.s32.totalorder %s69, %s83
      %p85 = scmp.eq.s32.totalorder %s38, 0
      %p86 = por %p84, %p85
      %s88 = sadd.s32 %s87, 1
      %p91 = scmp.eq.s32.totalorder %s32, 1
      %p92 = scmp.ne.s32.totalorder %s87, %s89
      %p93 = scmp.eq.s32.totalorder %s32, 0
      %p94 = por %p92, %p93
      %p95 = scmp.ne.s32.totalorder %s87, %s89
      %p96 = scmp.eq.s32.totalorder %s37, 1
      %p97 = por %p95, %p96
      %p98 = scmp.ne.s32.totalorder %s89, %s90
      %p99 = scmp.eq.s32.totalorder %s37, 0
      %p100 = por %p98, %p99
      %p101 = scmp.ne.s32.totalorder %s89, %s90
      %p102 = scmp.eq.s32.totalorder %s38, 1
      %p103 = por %p101, %p102
      %p105 = scmp.ne.s32.totalorder %s90, %s104
      %p106 = scmp.eq.s32.totalorder %s38, 0
      %p107 = por %p105, %p106
      %s109 = sadd.s32 %s108, 1
      %p112 = scmp.eq.s32.totalorder %s32, 1
      %p113 = scmp.ne.s32.totalorder %s108, %s110
      %p114 = scmp.eq.s32.totalorder %s32, 0
      %p115 = por %p113, %p114
      %p116 = scmp.ne.s32.totalorder %s108, %s110
      %p117 = scmp.eq.s32.totalorder %s37, 1
      %p118 = por %p116, %p117
      %p119 = scmp.ne.s32.totalorder %s110, %s111
      %p120 = scmp.eq.s32.totalorder %s37, 0
      %p121 = por %p119, %p120
      %p122 = scmp.ne.s32.totalorder %s110, %s111
      %p123 = scmp.eq.s32.totalorder %s38, 1
      %p124 = por %p122, %p123
      %p126 = scmp.ne.s32.totalorder %s111, %s125
      %p127 = scmp.eq.s32.totalorder %s38, 0
      %p128 = por %p126, %p127
      %s130 = sadd.s32 %s129, 1
      %p133 = scmp.eq.s32.totalorder %s32, 1
      %p134 = scmp.ne.s32.totalorder %s129, %s131
      %p135 = scmp.eq.s32.totalorder %s32, 0
      %p136 = por %p134, %p135
      %p137 = scmp.ne.s32.totalorder %s129, %s131
      %p138 = scmp.eq.s32.totalorder %s37, 1
      %p139 = por %p137, %p138
      %p140 = scmp.ne.s32.totalorder %s131, %s132
      %p141 = scmp.eq.s32.totalorder %s37, 0
      %p142 = por %p140, %p141
      %p143 = scmp.ne.s32.totalorder %s131, %s132
      %p144 = scmp.eq.s32.totalorder %s38, 1
      %p145 = por %p143, %p144
      %p147 = scmp.ne.s32.totalorder %s132, %s146
      %p148 = scmp.eq.s32.totalorder %s38, 0
      %p149 = por %p147, %p148
      %s151 = sadd.s32 %s150, 1
      %p154 = scmp.eq.s32.totalorder %s32, 1
      %p155 = scmp.ne.s32.totalorder %s150, %s152
      %p156 = scmp.eq.s32.totalorder %s32, 0
      %p157 = por %p155, %p156
      %p158 = scmp.ne.s32.totalorder %s150, %s152
      %p159 = scmp.eq.s32.totalorder %s37, 1
      %p160 = por %p158, %p159
      %p161 = scmp.ne.s32.totalorder %s152, %s153
      %p162 = scmp.eq.s32.totalorder %s37, 0
      %p163 = por %p161, %p162
      %p164 = scmp.ne.s32.totalorder %s152, %s153
      %p165 = scmp.eq.s32.totalorder %s38, 1
      %p166 = por %p164, %p165
      %p168 = scmp.ne.s32.totalorder %s153, %s167
      %p169 = scmp.eq.s32.totalorder %s38, 0
      %p170 = por %p168, %p169
      %s172 = sadd.s32 %s171, 1
      %p175 = scmp.eq.s32.totalorder %s32, 1
      %p176 = scmp.ne.s32.totalorder %s171, %s173
      %p177 = scmp.eq.s32.totalorder %s32, 0
      %p178 = por %p176, %p177
      %p179 = scmp.ne.s32.totalorder %s171, %s173
      %p180 = scmp.eq.s32.totalorder %s37, 1
      %p181 = por %p179, %p180
      %p182 = scmp.ne.s32.totalorder %s173, %s174
      %p183 = scmp.eq.s32.totalorder %s37, 0
      %p184 = por %p182, %p183
      %p185 = scmp.ne.s32.totalorder %s173, %s174
      %p186 = scmp.eq.s32.totalorder %s38, 1
      %p187 = por %p185, %p186
      %p189 = scmp.ne.s32.totalorder %s174, %s188
      %p190 = scmp.eq.s32.totalorder %s38, 0
      %p191 = por %p189, %p190
      %s192 = sld [smem:[#allocation6]]
      %s193 = sld [smem:[#allocation6]]
      %s194 = ssub.s32 %s192, %s193
      %p195 = scmp.eq.s32.totalorder %s194, 0
      %s197 = sadd.s32 %s196, 1
      %s198 = scalar_select %p195, %s196, %s197
      %p201 = pneg %p195
      %p202 = scmp.eq.s32.totalorder %s32, 1
      %p203 = por %p201, %p202
      %p204 = scmp.ne.s32.totalorder %s196, %s199
      %p205 = scmp.eq.s32.totalorder %s32, 0
      %p206 = por %p204, %p205
      %p207 = scmp.ne.s32.totalorder %s196, %s199
      %p208 = scmp.eq.s32.totalorder %s37, 1
      %p209 = por %p207, %p208
      %p210 = scmp.ne.s32.totalorder %s199, %s200
      %p211 = scmp.eq.s32.totalorder %s37, 0
      %p212 = por %p210, %p211
      %p213 = scmp.ne.s32.totalorder %s199, %s200
      %p214 = scmp.eq.s32.totalorder %s38, 1
      %p215 = por %p213, %p214
      %p217 = scmp.ne.s32.totalorder %s200, %s216
      %p218 = scmp.eq.s32.totalorder %s38, 0
      %p219 = por %p217, %p218
      %s221 = sadd.s32 %s220, 1
      %p224 = scmp.eq.s32.totalorder %s32, 1
      %p225 = scmp.ne.s32.totalorder %s220, %s222
      %p226 = scmp.eq.s32.totalorder %s32, 0
      %p227 = por %p225, %p226
      %p228 = scmp.ne.s32.totalorder %s220, %s222
      %p229 = scmp.eq.s32.totalorder %s37, 1
      %p230 = por %p228, %p229
      %p231 = scmp.ne.s32.totalorder %s222, %s223
      %p232 = scmp.eq.s32.totalorder %s37, 0
      %p233 = por %p231, %p232
      %p234 = scmp.ne.s32.totalorder %s222, %s223
      %p235 = scmp.eq.s32.totalorder %s38, 1
      %p236 = por %p234, %p235
      %p238 = scmp.ne.s32.totalorder %s223, %s237
      %p239 = scmp.eq.s32.totalorder %s38, 0
      %p240 = por %p238, %p239
      %s242 = sadd.s32 %s241, 1
      %p245 = scmp.eq.s32.totalorder %s32, 1
      %p246 = scmp.ne.s32.totalorder %s241, %s243
      %p247 = scmp.eq.s32.totalorder %s32, 0
      %p248 = por %p246, %p247
      %p249 = scmp.ne.s32.totalorder %s241, %s243
      %p250 = scmp.eq.s32.totalorder %s37, 1
      %p251 = por %p249, %p250
      %p252 = scmp.ne.s32.totalorder %s243, %s244
      %p253 = scmp.eq.s32.totalorder %s37, 0
      %p254 = por %p252, %p253
      %p255 = scmp.ne.s32.totalorder %s243, %s244
      %p256 = scmp.eq.s32.totalorder %s38, 1
      %p257 = por %p255, %p256
      %p259 = scmp.ne.s32.totalorder %s244, %s258
      %p260 = scmp.eq.s32.totalorder %s38, 0
      %p261 = por %p259, %p260
      %s263 = sadd.s32 %s262, 1
      %p266 = scmp.eq.s32.totalorder %s32, 1
      %p267 = scmp.ne.s32.totalorder %s262, %s264
      %p268 = scmp.eq.s32.totalorder %s32, 0
      %p269 = por %p267, %p268
      %p270 = scmp.ne.s32.totalorder %s262, %s264
      %p271 = scmp.eq.s32.totalorder %s37, 1
      %p272 = por %p270, %p271
      %p273 = scmp.ne.s32.totalorder %s264, %s265
      %p274 = scmp.eq.s32.totalorder %s37, 0
      %p275 = por %p273, %p274
      %p276 = scmp.ne.s32.totalorder %s264, %s265
      %p277 = scmp.eq.s32.totalorder %s38, 1
      %p278 = por %p276, %p277
      %p280 = scmp.ne.s32.totalorder %s265, %s279
      %p281 = scmp.eq.s32.totalorder %s38, 0
      %p282 = por %p280, %p281
      %s284 = sadd.s32 %s283, 1
      %p287 = scmp.eq.s32.totalorder %s32, 1
      %p288 = scmp.ne.s32.totalorder %s283, %s285
      %p289 = scmp.eq.s32.totalorder %s32, 0
      %p290 = por %p288, %p289
      %p291 = scmp.ne.s32.totalorder %s283, %s285
      %p292 = scmp.eq.s32.totalorder %s37, 1
      %p293 = por %p291, %p292
      %p294 = scmp.ne.s32.totalorder %s285, %s286
      %p295 = scmp.eq.s32.totalorder %s37, 0
      %p296 = por %p294, %p295
      %p297 = scmp.ne.s32.totalorder %s285, %s286
      %p298 = scmp.eq.s32.totalorder %s38, 1
      %p299 = por %p297, %p298
      %p301 = scmp.ne.s32.totalorder %s286, %s300
      %p302 = scmp.eq.s32.totalorder %s38, 0
      %p303 = por %p301, %p302
      %s305 = sadd.s32 %s304, 1
      %p308 = scmp.eq.s32.totalorder %s32, 1
      %p309 = scmp.ne.s32.totalorder %s304, %s306
      %p310 = scmp.eq.s32.totalorder %s32, 0
      %p311 = por %p309, %p310
      %p312 = scmp.ne.s32.totalorder %s304, %s306
      %p313 = scmp.eq.s32.totalorder %s37, 1
      %p314 = por %p312, %p313
      %p315 = scmp.ne.s32.totalorder %s306, %s307
      %p316 = scmp.eq.s32.totalorder %s37, 0
      %p317 = por %p315, %p316
      %p318 = scmp.ne.s32.totalorder %s306, %s307
      %p319 = scmp.eq.s32.totalorder %s38, 1
      %p320 = por %p318, %p319
      %p322 = scmp.ne.s32.totalorder %s307, %s321
      %p323 = scmp.eq.s32.totalorder %s38, 0
      %p324 = por %p322, %p323
      %s326 = sadd.s32 %s325, 1
      %p329 = scmp.eq.s32.totalorder %s32, 1
      %p330 = scmp.ne.s32.totalorder %s325, %s327
      %p331 = scmp.eq.s32.totalorder %s32, 0
      %p332 = por %p330, %p331
      %p333 = scmp.ne.s32.totalorder %s325, %s327
      %p334 = scmp.eq.s32.totalorder %s37, 1
      %p335 = por %p333, %p334
      %p336 = scmp.ne.s32.totalorder %s327, %s328
      %p337 = scmp.eq.s32.totalorder %s37, 0
      %p338 = por %p336, %p337
      %p339 = scmp.ne.s32.totalorder %s327, %s328
      %p340 = scmp.eq.s32.totalorder %s38, 1
      %p341 = por %p339, %p340
      %p343 = scmp.ne.s32.totalorder %s328, %s342
      %p344 = scmp.eq.s32.totalorder %s38, 0
      %p345 = por %p343, %p344
      %s347 = sadd.s32 %s346, 1
      %p350 = scmp.eq.s32.totalorder %s32, 1
      %p351 = scmp.ne.s32.totalorder %s346, %s348
      %p352 = scmp.eq.s32.totalorder %s32, 0
      %p353 = por %p351, %p352
      %p354 = scmp.ne.s32.totalorder %s346, %s348
      %p355 = scmp.eq.s32.totalorder %s37, 1
      %p356 = por %p354, %p355
      %p357 = scmp.ne.s32.totalorder %s348, %s349
      %p358 = scmp.eq.s32.totalorder %s37, 0
      %p359 = por %p357, %p358
      %p360 = scmp.ne.s32.totalorder %s348, %s349
      %p361 = scmp.eq.s32.totalorder %s38, 1
      %p362 = por %p360, %p361
      %p364 = scmp.ne.s32.totalorder %s349, %s363
      %p365 = scmp.eq.s32.totalorder %s38, 0
      %p366 = por %p364, %p365
      %s367 = ssub.s32 %s32, %s39
      %p368 = scmp.eq.s32.totalorder %s367, 0
      %s370 = sadd.s32 %s369, 1
      %s371 = scalar_select %p368, %s369, %s370
      %p374 = pneg %p368
      %p375 = scmp.eq.s32.totalorder %s32, 1
      %p376 = por %p374, %p375
      %p377 = scmp.ne.s32.totalorder %s369, %s372
      %p378 = scmp.eq.s32.totalorder %s32, 0
      %p379 = por %p377, %p378
      %p380 = scmp.ne.s32.totalorder %s369, %s372
      %p381 = scmp.eq.s32.totalorder %s37, 1
      %p382 = por %p380, %p381
      %p383 = scmp.ne.s32.totalorder %s372, %s373
      %p384 = scmp.eq.s32.totalorder %s37, 0
      %p385 = por %p383, %p384
      %p386 = scmp.ne.s32.totalorder %s372, %s373
      %p387 = scmp.eq.s32.totalorder %s38, 1
      %p388 = por %p386, %p387
      %p390 = scmp.ne.s32.totalorder %s373, %s389
      %p391 = scmp.eq.s32.totalorder %s38, 0
      %p392 = por %p390, %p391
      %s394 = sadd.s32 %s393, 1
      %p397 = scmp.eq.s32.totalorder %s32, 1
      %p398 = scmp.ne.s32.totalorder %s393, %s395
      %p399 = scmp.eq.s32.totalorder %s32, 0
      %p400 = por %p398, %p399
      %p401 = scmp.ne.s32.totalorder %s393, %s395
      %p402 = scmp.eq.s32.totalorder %s37, 1
      %p403 = por %p401, %p402
      %p404 = scmp.ne.s32.totalorder %s395, %s396
      %p405 = scmp.eq.s32.totalorder %s37, 0
      %p406 = por %p404, %p405
      %p407 = scmp.ne.s32.totalorder %s395, %s396
      %p408 = scmp.eq.s32.totalorder %s38, 1
      %p409 = por %p407, %p408
      %p411 = scmp.ne.s32.totalorder %s396, %s410
      %p412 = scmp.eq.s32.totalorder %s38, 0
      %p413 = por %p411, %p412
      %s415 = sadd.s32 %s414, 1
      %p418 = scmp.eq.s32.totalorder %s32, 1
      %p419 = scmp.ne.s32.totalorder %s414, %s416
      %p420 = scmp.eq.s32.totalorder %s32, 0
      %p421 = por %p419, %p420
      %p422 = scmp.ne.s32.totalorder %s414, %s416
      %p423 = scmp.eq.s32.totalorder %s37, 1
      %p424 = por %p422, %p423
      %p425 = scmp.ne.s32.totalorder %s416, %s417
      %p426 = scmp.eq.s32.totalorder %s37, 0
      %p427 = por %p425, %p426
      %p428 = scmp.ne.s32.totalorder %s416, %s417
      %p429 = scmp.eq.s32.totalorder %s38, 1
      %p430 = por %p428, %p429
      %p432 = scmp.ne.s32.totalorder %s417, %s431
      %p433 = scmp.eq.s32.totalorder %s38, 0
      %p434 = por %p432, %p433
      %p435 = scmp.le.s32.totalorder 1, %s32
      %p436 = scmp.lt.s32.totalorder %s32, 3
      %p437 = pnand %p435, %p436
      %p438 = pneg %p437
      // Predicated region
      $region9: #{topic_conditioned_forward.1} parent=5 // pred_check
        _
      $region10: #{topic_conditioned_forward.1} parent=5 // pred_check_branch
        %440 = sbr.rel (%p437) target = $region12
      $region11: #{topic_conditioned_forward.1} parent=5 // pred_region
        %s441 = ssub.s32 %s32, 1
        // Predicated region
        $region13: #{topic_conditioned_forward.1} parent=11 // pred_check
          %p442 = pneg %p79
        $region14: #{topic_conditioned_forward.1} parent=11 // pred_check_branch
          %444 = sbr.rel (%p442) target = $region16
        $region15: #{topic_conditioned_forward.1} parent=11 // pred_region
          _
        $region16: #{topic_conditioned_forward.1} parent=11 // pred_fallthru
          _
        // Predicated region
        $region17: #{topic_conditioned_forward.1} parent=11 // pred_check
          %p445 = pneg %p100
        $region18: #{topic_conditioned_forward.1} parent=11 // pred_check_branch
          %447 = sbr.rel (%p445) target = $region20
        $region19: #{topic_conditioned_forward.1} parent=11 // pred_region
          _
        $region20: #{topic_conditioned_forward.1} parent=11 // pred_fallthru
          _
        // Predicated region
        $region21: #{topic_conditioned_forward.1} parent=11 // pred_check
          %p448 = pneg %p121
        $region22: #{topic_conditioned_forward.1} parent=11 // pred_check_branch
          %450 = sbr.rel (%p448) target = $region24
        $region23: #{topic_conditioned_forward.1} parent=11 // pred_region
          _
        $region24: #{topic_conditioned_forward.1} parent=11 // pred_fallthru
          _
        // Predicated region
        $region25: #{topic_conditioned_forward.1} parent=11 // pred_check
          %p451 = pneg %p142
        $region26: #{topic_conditioned_forward.1} parent=11 // pred_check_branch
          %453 = sbr.rel (%p451) target = $region28
        $region27: #{topic_conditioned_forward.1} parent=11 // pred_region
          _
        $region28: #{topic_conditioned_forward.1} parent=11 // pred_fallthru
          _
        // Predicated region
        $region29: #{topic_conditioned_forward.1} parent=11 // pred_check
          %p454 = pneg %p163
        $region30: #{topic_conditioned_forward.1} parent=11 // pred_check_branch
          %456 = sbr.rel (%p454) target = $region32
        $region31: #{topic_conditioned_forward.1} parent=11 // pred_region
          _
        $region32: #{topic_conditioned_forward.1} parent=11 // pred_fallthru
          _
        // Predicated region
        $region33: #{topic_conditioned_forward.1} parent=11 // pred_check
          %p457 = pneg %p184
        $region34: #{topic_conditioned_forward.1} parent=11 // pred_check_branch
          %459 = sbr.rel (%p457) target = $region36
        $region35: #{topic_conditioned_forward.1} parent=11 // pred_region
          _
        $region36: #{topic_conditioned_forward.1} parent=11 // pred_fallthru
          _
        // Predicated region
        $region37: #{topic_conditioned_forward.1} parent=11 // pred_check
          %p460 = pneg %p212
        $region38: #{topic_conditioned_forward.1} parent=11 // pred_check_branch
          %462 = sbr.rel (%p460) target = $region40
        $region39: #{topic_conditioned_forward.1} parent=11 // pred_region
          %s463 = sld [smem:[#allocation6]]
          %p464 = scmp.lt.s32.totalorder %s463, 15
          %s465 = scalar_select %p464, %s463, 15
          %s466 = scalar_lea.vmem %s8, %s465
          %s467 = sld [smem:[#allocation6]]
        $region40: #{topic_conditioned_forward.1} parent=11 // pred_fallthru
          _
        // Predicated region
        $region41: #{topic_conditioned_forward.1} parent=11 // pred_check
          %p468 = pneg %p233
        $region42: #{topic_conditioned_forward.1} parent=11 // pred_check_branch
          %470 = sbr.rel (%p468) target = $region44
        $region43: #{topic_conditioned_forward.1} parent=11 // pred_region
          %s472 = ssub.s32 4096, 4096
          %473 = vsyncadd [#allocation9], %s472
          %s474 = sshll.u32 [#allocation8], 4
          %s475 = int_to_ptr.vmem [resolvable:$true] %s474
          %480 = dma.hbm_to_vmem [thread:$0]  %s9, 4096, %s475, [#allocation9], 256, 256, 16
        $region44: #{topic_conditioned_forward.1} parent=11 // pred_fallthru
          _
        // Predicated region
        $region45: #{topic_conditioned_forward.1} parent=11 // pred_check
          %p481 = pneg %p254
        $region46: #{topic_conditioned_forward.1} parent=11 // pred_check_branch
          %483 = sbr.rel (%p481) target = $region48
        $region47: #{topic_conditioned_forward.1} parent=11 // pred_region
          _
        $region48: #{topic_conditioned_forward.1} parent=11 // pred_fallthru
          _
        // Predicated region
        $region49: #{topic_conditioned_forward.1} parent=11 // pred_check
          %p484 = pneg %p275
        $region50: #{topic_conditioned_forward.1} parent=11 // pred_check_branch
          %486 = sbr.rel (%p484) target = $region52
        $region51: #{topic_conditioned_forward.1} parent=11 // pred_region
          _
        $region52: #{topic_conditioned_forward.1} parent=11 // pred_fallthru
          _
        // Predicated region
        $region53: #{topic_conditioned_forward.1} parent=11 // pred_check
          %p487 = pneg %p296
        $region54: #{topic_conditioned_forward.1} parent=11 // pred_check_branch
          %489 = sbr.rel (%p487) target = $region56
        $region55: #{topic_conditioned_forward.1} parent=11 // pred_region
          _
        $region56: #{topic_conditioned_forward.1} parent=11 // pred_fallthru
          _
        // Predicated region
        $region57: #{topic_conditioned_forward.1} parent=11 // pred_check
          %p490 = pneg %p317
        $region58: #{topic_conditioned_forward.1} parent=11 // pred_check_branch
          %492 = sbr.rel (%p490) target = $region60
        $region59: #{topic_conditioned_forward.1} parent=11 // pred_region
          _
        $region60: #{topic_conditioned_forward.1} parent=11 // pred_fallthru
          _
        // Predicated region
        $region61: #{topic_conditioned_forward.1} parent=11 // pred_check
          %p493 = pneg %p338
        $region62: #{topic_conditioned_forward.1} parent=11 // pred_check_branch
          %495 = sbr.rel (%p493) target = $region64
        $region63: #{topic_conditioned_forward.1} parent=11 // pred_region
          %s497 = ssub.s32 4096, 4096
          %498 = vsyncadd [#allocation12], %s497
          %s499 = sshll.u32 [#allocation11], 4
          %s500 = int_to_ptr.vmem [resolvable:$true] %s499
          %505 = dma.hbm_to_vmem [thread:$0]  %s14, 4096, %s500, [#allocation12], 128, 128, 8
        $region64: #{topic_conditioned_forward.1} parent=11 // pred_fallthru
          _
        // Predicated region
        $region65: #{topic_conditioned_forward.1} parent=11 // pred_check
          %p506 = pneg %p359
        $region66: #{topic_conditioned_forward.1} parent=11 // pred_check_branch
          %508 = sbr.rel (%p506) target = $region68
        $region67: #{topic_conditioned_forward.1} parent=11 // pred_region
          _
        $region68: #{topic_conditioned_forward.1} parent=11 // pred_fallthru
          _
      $region12: #{topic_conditioned_forward.1} parent=5 // pred_fallthru
        _
      %p509 = scmp.lt.s32.totalorder %s32, 2
      // Predicated region
      $region69: #{topic_conditioned_forward.1} parent=5 // pred_check
        %p510 = pneg %p509
      $region70: #{topic_conditioned_forward.1} parent=5 // pred_check_branch
        %512 = sbr.rel (%p510) target = $region72
      $region71: #{topic_conditioned_forward.1} parent=5 // pred_region
        // Predicated region
        $region73: #{topic_conditioned_forward.1} parent=71 // pred_check
          %p513 = pneg %p52
        $region74: #{topic_conditioned_forward.1} parent=71 // pred_check_branch
          %515 = sbr.rel (%p513) target = $region76
        $region75: #{topic_conditioned_forward.1} parent=71 // pred_region
          %s516 = smul.u32 16, %s32
          %p517 = scmp.lt.s32.totalorder %s516, 31
          %s518 = scalar_select %p517, %s516, 31
          %s519 = smul.addr %s518, 8
          %s520 = scalar_lea.vmem %s1, %s519
          %s521 = smul.u32 16, %s32
        $region76: #{topic_conditioned_forward.1} parent=71 // pred_fallthru
          _
      $region72: #{topic_conditioned_forward.1} parent=5 // pred_fallthru
        _
      %p522 = scmp.le.s32.totalorder 1, %s32
      %p523 = scmp.lt.s32.totalorder %s32, 3
      %p524 = pnand %p522, %p523
      %p525 = pneg %p524
      // Predicated region
      $region77: #{topic_conditioned_forward.1} parent=5 // pred_check
        _
      $region78: #{topic_conditioned_forward.1} parent=5 // pred_check_branch
        %527 = sbr.rel (%p524) target = $region80
      $region79: #{topic_conditioned_forward.1} parent=5 // pred_region
        %s528 = ssub.s32 %s32, 1
        // Predicated region
        $region81: #{topic_conditioned_forward.1} parent=79 // pred_check
          %p529 = pneg %p233
        $region82: #{topic_conditioned_forward.1} parent=79 // pred_check_branch
          %531 = sbr.rel (%p529) target = $region84
        $region83: #{topic_conditioned_forward.1} parent=79 // pred_region
          %532 = dma.done [#allocation9], 4096
        $region84: #{topic_conditioned_forward.1} parent=79 // pred_fallthru
          _
        // Predicated region
        $region85: #{topic_conditioned_forward.1} parent=79 // pred_check
          %p533 = pneg %p338
        $region86: #{topic_conditioned_forward.1} parent=79 // pred_check_branch
          %535 = sbr.rel (%p533) target = $region88
        $region87: #{topic_conditioned_forward.1} parent=79 // pred_region
          %536 = dma.done [#allocation12], 4096
        $region88: #{topic_conditioned_forward.1} parent=79 // pred_fallthru
          _
        %s537 = smul.u32 16, %s37
        %p538 = scmp.lt.s32.totalorder %s537, 31
        %s539 = scalar_select %p538, %s537, 31
        %s540 = smul.addr %s539, 8
        %s541 = scalar_lea.vmem %s1, %s540
        %p542 = pneg %p58
        %p543 = pneg %p55
        %p544 = pneg %p79
        %p545 = pneg %p76
        %p546 = pneg %p100
        %p547 = pneg %p97
        %p548 = pneg %p121
        %p549 = pneg %p118
        %p550 = pneg %p142
        %p551 = pneg %p139
        %p552 = pneg %p163
        %p553 = pneg %p160
        %p554 = pneg %p184
        %p555 = pneg %p181
        %s556 = sld [smem:[#allocation6]]
        %p557 = scmp.lt.s32.totalorder %s556, 15
        %s558 = scalar_select %p557, %s556, 15
        %s559 = scalar_lea.vmem %s8, %s558
        %p560 = pneg %p212
        %p561 = pneg %p209
        %p562 = pneg %p233
        %p563 = pneg %p230
        %p564 = pneg %p254
        %p565 = pneg %p251
        %p566 = pneg %p275
        %p567 = pneg %p272
        %p568 = pneg %p296
        %p569 = pneg %p293
        %p570 = pneg %p317
        %p571 = pneg %p314
        %p572 = pneg %p338
        %p573 = pneg %p335
        %p574 = pneg %p359
        %p575 = pneg %p356
        %p576 = pneg %p385
        %p577 = pneg %p382
        %p578 = scmp.lt.s32.totalorder %s37, 1
        %s579 = scalar_select %p578, %s37, 1
        %s580 = scalar_lea.vmem %s16, %s579
        %p581 = pneg %p406
        %p582 = pneg %p403
        %p583 = pneg %p427
        %p584 = pneg %p424
        %s585 = smul.u32 16, %s37
        %p586 = scmp.lt.s32.totalorder %s585, 31
        %s587 = scalar_select %p586, %s585, 31
        %s588 = smul.addr %s587, 8
        %s589 = scalar_lea.vmem %s1, %s588
        %s590 = smul.u32 16, %s37
        %s591 = sld [smem:[#allocation6]]
        %p592 = scmp.lt.s32.totalorder %s591, 15
        %s593 = scalar_select %p592, %s591, 15
        %s594 = scalar_lea.vmem %s8, %s593
        %s595 = sld [smem:[#allocation6]]
        %p596 = scmp.lt.s32.totalorder %s37, 1
        %s597 = scalar_select %p596, %s37, 1
        %s598 = scalar_lea.vmem %s16, %s597
        %p600 = scmp.eq.s32.totalorder %s37, 0
        // Predicated region
        $region89: #{topic_conditioned_forward.1} parent=79 // pred_check
          %p601 = pneg %p600
        $region90: #{topic_conditioned_forward.1} parent=79 // pred_check_branch
          %603 = sbr.rel (%p601) target = $region92
        $region91: #{topic_conditioned_forward.1} parent=79 // pred_region
          %vm604 = vcmask 0
          %605 = vst.msk [vmem:[#allocation2] sm:$0x1] %vm604, -inf
          %606 = vst.msk [vmem:[#allocation3] sm:$0x1] %vm604, 0.0
          %607 = vst [vmem:[#allocation4] sm:$0x1] 0.0
        $region92: #{topic_conditioned_forward.1} parent=79 // pred_fallthru
          _
        %v608 = vld [vmem:[%s589] sm:$0xff]
        %v609 = vld [vmem:[%s589 + $0x8] sm:$0xff]
        %v610 = vld [vmem:[%s589 + $0x10] sm:$0xff]
        %v611 = vld [vmem:[%s589 + $0x18] sm:$0xff]
        %v612 = vld [vmem:[%s589 + $0x20] sm:$0xff]
        %v613 = vld [vmem:[%s589 + $0x28] sm:$0xff]
        %v614 = vld [vmem:[%s589 + $0x30] sm:$0xff]
        %v615 = vld [vmem:[%s589 + $0x38] sm:$0xff]
        %v616 = vld [vmem:[%s589 + $0x40] sm:$0xff]
        %v617 = vld [vmem:[%s589 + $0x48] sm:$0xff]
        %v618 = vld [vmem:[%s589 + $0x50] sm:$0xff]
        %v619 = vld [vmem:[%s589 + $0x58] sm:$0xff]
        %v620 = vld [vmem:[%s589 + $0x60] sm:$0xff]
        %v621 = vld [vmem:[%s589 + $0x68] sm:$0xff]
        %v622 = vld [vmem:[%s589 + $0x70] sm:$0xff]
        %v623 = vld [vmem:[%s589 + $0x78] sm:$0xff]
        %v624 = vpack.c.bf16 %v609, %v608
        %v625 = vpack.c.bf16 %v611, %v610
        %v626 = vpack.c.bf16 %v613, %v612
        %v627 = vpack.c.bf16 %v615, %v614
        %v628 = vpack.c.bf16 %v617, %v616
        %v629 = vpack.c.bf16 %v619, %v618
        %v630 = vpack.c.bf16 %v621, %v620
        %v631 = vpack.c.bf16 %v623, %v622
        %v632 = vld [vmem:[%s2] sm:$0xff]
        %v633 = vld [vmem:[%s2 + $0x8] sm:$0xff]
        %v634 = vld [vmem:[%s2 + $0x10] sm:$0xff]
        %v635 = vld [vmem:[%s2 + $0x18] sm:$0xff]
        %v636 = vld [vmem:[%s2 + $0x20] sm:$0xff]
        %v637 = vld [vmem:[%s2 + $0x28] sm:$0xff]
        %v638 = vld [vmem:[%s2 + $0x30] sm:$0xff]
        %v639 = vld [vmem:[%s2 + $0x38] sm:$0xff]
        %v640 = vld [vmem:[%s2 + $0x40] sm:$0xff]
        %v641 = vld [vmem:[%s2 + $0x48] sm:$0xff]
        %v642 = vld [vmem:[%s2 + $0x50] sm:$0xff]
        %v643 = vld [vmem:[%s2 + $0x58] sm:$0xff]
        %v644 = vld [vmem:[%s2 + $0x60] sm:$0xff]
        %v645 = vld [vmem:[%s2 + $0x68] sm:$0xff]
        %v646 = vld [vmem:[%s2 + $0x70] sm:$0xff]
        %v647 = vld [vmem:[%s2 + $0x78] sm:$0xff]
        %v648 = vld [vmem:[%s3] sm:$0x3]
        %v650 = vlaneseq
        %v651 = vshrl.u32 %v650, 7
        %v652 = vsub.s32 0, %v651
        %v653 = vrot.slane %v648, %v652
        %v654 = vlaneseq
        %v655 = vshrl.u32 %v654, 7
        %v656 = vsub.s32 1, %v655
        %v657 = vrot.slane %v648, %v656
        %v676 = vunpack.c.l.b16 %v632
        %v677 = vunpack.c.h.b16 %v632
        %v678 = vunpack.c.l.b16 %v633
        %v679 = vunpack.c.h.b16 %v633
        %v680 = vunpack.c.l.b16 %v634
        %v681 = vunpack.c.h.b16 %v634
        %v682 = vunpack.c.l.b16 %v635
        %v683 = vunpack.c.h.b16 %v635
        %v684 = vunpack.c.l.b16 %v636
        %v685 = vunpack.c.h.b16 %v636
        %v686 = vunpack.c.l.b16 %v637
        %v687 = vunpack.c.h.b16 %v637
        %v688 = vunpack.c.l.b16 %v638
        %v689 = vunpack.c.h.b16 %v638
        %v690 = vunpack.c.l.b16 %v639
        %v691 = vunpack.c.h.b16 %v639
        %v692 = vunpack.c.l.b16 %v640
        %v693 = vunpack.c.h.b16 %v640
        %v694 = vunpack.c.l.b16 %v641
        %v695 = vunpack.c.h.b16 %v641
        %v696 = vunpack.c.l.b16 %v642
        %v697 = vunpack.c.h.b16 %v642
        %v698 = vunpack.c.l.b16 %v643
        %v699 = vunpack.c.h.b16 %v643
        %v700 = vunpack.c.l.b16 %v644
        %v701 = vunpack.c.h.b16 %v644
        %v702 = vunpack.c.l.b16 %v645
        %v703 = vunpack.c.h.b16 %v645
        %v704 = vunpack.c.l.b16 %v646
        %v705 = vunpack.c.h.b16 %v646
        %v706 = vunpack.c.l.b16 %v647
        %v707 = vunpack.c.h.b16 %v647
        %v708 = vpack.c.b16 %v678, %v676
        %v709 = vpack.c.b16 %v679, %v677
        %v710 = vpack.c.b16 %v682, %v680
        %v711 = vpack.c.b16 %v683, %v681
        %v712 = vpack.c.b16 %v686, %v684
        %v713 = vpack.c.b16 %v687, %v685
        %v714 = vpack.c.b16 %v690, %v688
        %v715 = vpack.c.b16 %v691, %v689
        %v716 = vpack.c.b16 %v694, %v692
        %v717 = vpack.c.b16 %v695, %v693
        %v718 = vpack.c.b16 %v698, %v696
        %v719 = vpack.c.b16 %v699, %v697
        %v720 = vpack.c.b16 %v702, %v700
        %v721 = vpack.c.b16 %v703, %v701
        %v722 = vpack.c.b16 %v706, %v704
        %v723 = vpack.c.b16 %v707, %v705
        %740 = vmatprep.subr.bf16.mxu0 %v709
        %741 = vmatpush1.bf16.msra.mxu0 %v708
        %742 = vmatprep.subr.bf16.mxu0 %v711
        %743 = vmatpush1.bf16.msra.mxu0 %v710
        %744 = vmatprep.subr.bf16.mxu0 %v713
        %745 = vmatpush1.bf16.msra.mxu0 %v712
        %746 = vmatprep.subr.bf16.mxu0 %v715
        %747 = vmatpush1.bf16.msra.mxu0 %v714
        %748 = vmatprep.subr.bf16.mxu0 %v717
        %749 = vmatpush1.bf16.msra.mxu0 %v716
        %750 = vmatprep.subr.bf16.mxu0 %v719
        %751 = vmatpush1.bf16.msra.mxu0 %v718
        %752 = vmatprep.subr.bf16.mxu0 %v721
        %753 = vmatpush1.bf16.msra.mxu0 %v720
        %754 = vmatprep.subr.bf16.mxu0 %v723
        %755 = vmatpush1.bf16.msra.mxu0 %v722
        %756 = vmatprep.subr.bf16.mxu0 0
        %757 = vmatpush1.bf16.msra.mxu0 0
        %758 = vmatprep.subr.bf16.mxu0 0
        %759 = vmatpush1.bf16.msra.mxu0 0
        %760 = vmatprep.subr.bf16.mxu0 0
        %761 = vmatpush1.bf16.msra.mxu0 0
        %762 = vmatprep.subr.bf16.mxu0 0
        %763 = vmatpush1.bf16.msra.mxu0 0
        %764 = vmatprep.subr.bf16.mxu0 0
        %765 = vmatpush1.bf16.msra.mxu0 0
        %766 = vmatprep.subr.bf16.mxu0 0
        %767 = vmatpush1.bf16.msra.mxu0 0
        %768 = vmatprep.subr.bf16.mxu0 0
        %769 = vmatpush1.bf16.msra.mxu0 0
        %770 = vmatprep.subr.bf16.mxu0 0
        %771 = vmatpush1.bf16.msra.mxu0 0
        %772 = vmatprep.mubr.bf16.mxu0 0
        %773 = vmatmul.mubr.bf16.gmra.mrb[0].mxu0 %v624
        %v774 = vpop.f32.mrb[0].mxu0
        %v775 = vadd.f32 %v653, %v774
        %v776 = vpop.f32.mrb[0].mxu0
        %v777 = vadd.f32 %v657, %v776
        %v778 = vpop.f32.mrb[0].mxu0
        %v779 = vadd.f32 %v653, %v778
        %v780 = vpop.f32.mrb[0].mxu0
        %v781 = vadd.f32 %v657, %v780
        %782 = vmatprep.mubr.bf16.mxu0 0
        %783 = vmatmul.mubr.bf16.gmra.mrb[0].mxu0 %v625
        %v784 = vpop.f32.mrb[0].mxu0
        %v785 = vadd.f32 %v653, %v784
        %v786 = vpop.f32.mrb[0].mxu0
        %v787 = vadd.f32 %v657, %v786
        %v788 = vpop.f32.mrb[0].mxu0
        %v789 = vadd.f32 %v653, %v788
        %v790 = vpop.f32.mrb[0].mxu0
        %v791 = vadd.f32 %v657, %v790
        %792 = vmatprep.mubr.bf16.mxu0 0
        %793 = vmatmul.mubr.bf16.gmra.mrb[0].mxu0 %v626
        %v794 = vpop.f32.mrb[0].mxu0
        %v795 = vadd.f32 %v653, %v794
        %v796 = vpop.f32.mrb[0].mxu0
        %v797 = vadd.f32 %v657, %v796
        %v798 = vpop.f32.mrb[0].mxu0
        %v799 = vadd.f32 %v653, %v798
        %v800 = vpop.f32.mrb[0].mxu0
        %v801 = vadd.f32 %v657, %v800
        %802 = vmatprep.mubr.bf16.mxu0 0
        %803 = vmatmul.mubr.bf16.gmra.mrb[0].mxu0 %v627
        %v804 = vpop.f32.mrb[0].mxu0
        %v805 = vadd.f32 %v653, %v804
        %v806 = vpop.f32.mrb[0].mxu0
        %v807 = vadd.f32 %v657, %v806
        %v808 = vpop.f32.mrb[0].mxu0
        %v809 = vadd.f32 %v653, %v808
        %v810 = vpop.f32.mrb[0].mxu0
        %v811 = vadd.f32 %v657, %v810
        %812 = vmatprep.mubr.bf16.mxu0 0
        %813 = vmatmul.mubr.bf16.gmra.mrb[0].mxu0 %v628
        %v814 = vpop.f32.mrb[0].mxu0
        %v815 = vadd.f32 %v653, %v814
        %v816 = vpop.f32.mrb[0].mxu0
        %v817 = vadd.f32 %v657, %v816
        %v818 = vpop.f32.mrb[0].mxu0
        %v819 = vadd.f32 %v653, %v818
        %v820 = vpop.f32.mrb[0].mxu0
        %v821 = vadd.f32 %v657, %v820
        %822 = vmatprep.mubr.bf16.mxu0 0
        %823 = vmatmul.mubr.bf16.gmra.mrb[0].mxu0 %v629
        %v824 = vpop.f32.mrb[0].mxu0
        %v825 = vadd.f32 %v653, %v824
        %v826 = vpop.f32.mrb[0].mxu0
        %v827 = vadd.f32 %v657, %v826
        %v828 = vpop.f32.mrb[0].mxu0
        %v829 = vadd.f32 %v653, %v828
        %v830 = vpop.f32.mrb[0].mxu0
        %v831 = vadd.f32 %v657, %v830
        %832 = vmatprep.mubr.bf16.mxu0 0
        %833 = vmatmul.mubr.bf16.gmra.mrb[0].mxu0 %v630
        %v834 = vpop.f32.mrb[0].mxu0
        %v835 = vadd.f32 %v653, %v834
        %v836 = vpop.f32.mrb[0].mxu0
        %v837 = vadd.f32 %v657, %v836
        %v838 = vpop.f32.mrb[0].mxu0
        %v839 = vadd.f32 %v653, %v838
        %v840 = vpop.f32.mrb[0].mxu0
        %v841 = vadd.f32 %v657, %v840
        %842 = vmatprep.mubr.bf16.mxu0 0
        %843 = vmatmul.mubr.bf16.gmra.mrb[0].mxu0 %v631
        %v844 = vpop.f32.mrb[0].mxu0
        %v845 = vadd.f32 %v653, %v844
        %v846 = vpop.f32.mrb[0].mxu0
        %v847 = vadd.f32 %v657, %v846
        %v848 = vpop.f32.mrb[0].mxu0
        %v849 = vadd.f32 %v653, %v848
        %v850 = vpop.f32.mrb[0].mxu0
        %v851 = vadd.f32 %v657, %v850
        %852 = vdwg.mxu0
        %853 = vmatprep.subr.mxu0 0.0
        %854 = vmatpush1.msra.mxu0 1.0
        %855 = vmatprep.subr.mxu0 0.0
        %856 = vmatpush1.msra.mxu0 1.0
        %857 = vmatprep.subr.mxu0 0.0
        %858 = vmatpush1.msra.mxu0 1.0
        %859 = vmatprep.subr.mxu0 0.0
        %860 = vmatpush1.msra.mxu0 1.0
        %861 = vmatprep.subr.mxu0 0.0
        %862 = vmatpush1.msra.mxu0 1.0
        %863 = vmatprep.subr.mxu0 0.0
        %864 = vmatpush1.msra.mxu0 1.0
        %865 = vmatprep.subr.mxu0 0.0
        %866 = vmatpush1.msra.mxu0 1.0
        %867 = vmatprep.subr.mxu0 0.0
        %868 = vmatpush1.msra.mxu0 1.0
        %869 = vmatprep.subr.mxu0 0.0
        %870 = vmatpush1.msra.mxu0 1.0
        %871 = vmatprep.subr.mxu0 0.0
        %872 = vmatpush1.msra.mxu0 1.0
        %873 = vmatprep.subr.mxu0 0.0
        %874 = vmatpush1.msra.mxu0 1.0
        %875 = vmatprep.subr.mxu0 0.0
        %876 = vmatpush1.msra.mxu0 1.0
        %877 = vmatprep.subr.mxu0 0.0
        %878 = vmatpush1.msra.mxu0 1.0
        %879 = vmatprep.subr.mxu0 0.0
        %880 = vmatpush1.msra.mxu0 1.0
        %881 = vmatprep.subr.mxu0 0.0
        %882 = vmatpush1.msra.mxu0 1.0
        %883 = vmatprep.subr.mxu0 0.0
        %884 = vmatpush1.msra.mxu0 1.0
        %885 = vmatprep.subr.mxu0 0.0
        %886 = vmatpush1.msra.mxu0 1.0
        %887 = vmatprep.subr.mxu0 0.0
        %888 = vmatpush1.msra.mxu0 1.0
        %889 = vmatprep.subr.mxu0 0.0
        %890 = vmatpush1.msra.mxu0 1.0
        %891 = vmatprep.subr.mxu0 0.0
        %892 = vmatpush1.msra.mxu0 1.0
        %893 = vmatprep.subr.mxu0 0.0
        %894 = vmatpush1.msra.mxu0 1.0
        %895 = vmatprep.subr.mxu0 0.0
        %896 = vmatpush1.msra.mxu0 1.0
        %897 = vmatprep.subr.mxu0 0.0
        %898 = vmatpush1.msra.mxu0 1.0
        %899 = vmatprep.subr.mxu0 0.0
        %900 = vmatpush1.msra.mxu0 1.0
        %901 = vmatprep.subr.mxu0 0.0
        %902 = vmatpush1.msra.mxu0 1.0
        %903 = vmatprep.subr.mxu0 0.0
        %904 = vmatpush1.msra.mxu0 1.0
        %905 = vmatprep.subr.mxu0 0.0
        %906 = vmatpush1.msra.mxu0 1.0
        %907 = vmatprep.subr.mxu0 0.0
        %908 = vmatpush1.msra.mxu0 1.0
        %909 = vmatprep.subr.mxu0 0.0
        %910 = vmatpush1.msra.mxu0 1.0
        %911 = vmatprep.subr.mxu0 0.0
        %912 = vmatpush1.msra.mxu0 1.0
        %913 = vmatprep.subr.mxu0 0.0
        %914 = vmatpush1.msra.mxu0 1.0
        %915 = vmatprep.subr.mxu0 0.0
        %916 = vmatpush1.msra.mxu0 1.0
        %917 = vmatprep.mubr.f32.mxu0 %v777
        %918 = vmatmul.mubr.f32.gmra.mrb[0].mxu0 %v775
        %v919 = vpop.f32.mrb[0].mxu0
        %v920 = vadd.f32 0.0, %v919
        %v921 = vpop.f32.mrb[0].mxu0
        %922 = vmatprep.mubr.f32.mxu0 %v781
        %923 = vmatmul.mubr.f32.gmra.mrb[0].mxu0 %v779
        %v924 = vpop.f32.mrb[0].mxu0
        %v925 = vadd.f32 0.0, %v924
        %v926 = vpop.f32.mrb[0].mxu0
        %927 = vmatprep.mubr.f32.mxu0 %v787
        %928 = vmatmul.mubr.f32.gmra.mrb[0].mxu0 %v785
        %v929 = vpop.f32.mrb[0].mxu0
        %v930 = vadd.f32 0.0, %v929
        %v931 = vpop.f32.mrb[0].mxu0
        %932 = vmatprep.mubr.f32.mxu0 %v791
        %933 = vmatmul.mubr.f32.gmra.mrb[0].mxu0 %v789
        %v934 = vpop.f32.mrb[0].mxu0
        %v935 = vadd.f32 0.0, %v934
        %v936 = vpop.f32.mrb[0].mxu0
        %937 = vmatprep.mubr.f32.mxu0 %v797
        %938 = vmatmul.mubr.f32.gmra.mrb[0].mxu0 %v795
        %v939 = vpop.f32.mrb[0].mxu0
        %v940 = vadd.f32 0.0, %v939
        %v941 = vpop.f32.mrb[0].mxu0
        %942 = vmatprep.mubr.f32.mxu0 %v801
        %943 = vmatmul.mubr.f32.gmra.mrb[0].mxu0 %v799
        %v944 = vpop.f32.mrb[0].mxu0
        %v945 = vadd.f32 0.0, %v944
        %v946 = vpop.f32.mrb[0].mxu0
        %947 = vmatprep.mubr.f32.mxu0 %v807
        %948 = vmatmul.mubr.f32.gmra.mrb[0].mxu0 %v805
        %v949 = vpop.f32.mrb[0].mxu0
        %v950 = vadd.f32 0.0, %v949
        %v951 = vpop.f32.mrb[0].mxu0
        %952 = vmatprep.mubr.f32.mxu0 %v811
        %953 = vmatmul.mubr.f32.gmra.mrb[0].mxu0 %v809
        %v954 = vpop.f32.mrb[0].mxu0
        %v955 = vadd.f32 0.0, %v954
        %v956 = vpop.f32.mrb[0].mxu0
        %957 = vmatprep.mubr.f32.mxu0 %v817
        %958 = vmatmul.mubr.f32.gmra.mrb[0].mxu0 %v815
        %v959 = vpop.f32.mrb[0].mxu0
        %v960 = vadd.f32 0.0, %v959
        %v961 = vpop.f32.mrb[0].mxu0
        %962 = vmatprep.mubr.f32.mxu0 %v821
        %963 = vmatmul.mubr.f32.gmra.mrb[0].mxu0 %v819
        %v964 = vpop.f32.mrb[0].mxu0
        %v965 = vadd.f32 0.0, %v964
        %v966 = vpop.f32.mrb[0].mxu0
        %967 = vmatprep.mubr.f32.mxu0 %v827
        %968 = vmatmul.mubr.f32.gmra.mrb[0].mxu0 %v825
        %v969 = vpop.f32.mrb[0].mxu0
        %v970 = vadd.f32 0.0, %v969
        %v971 = vpop.f32.mrb[0].mxu0
        %972 = vmatprep.mubr.f32.mxu0 %v831
        %973 = vmatmul.mubr.f32.gmra.mrb[0].mxu0 %v829
        %v974 = vpop.f32.mrb[0].mxu0
        %v975 = vadd.f32 0.0, %v974
        %v976 = vpop.f32.mrb[0].mxu0
        %977 = vmatprep.mubr.f32.mxu0 %v837
        %978 = vmatmul.mubr.f32.gmra.mrb[0].mxu0 %v835
        %v979 = vpop.f32.mrb[0].mxu0
        %v980 = vadd.f32 0.0, %v979
        %v981 = vpop.f32.mrb[0].mxu0
        %982 = vmatprep.mubr.f32.mxu0 %v841
        %983 = vmatmul.mubr.f32.gmra.mrb[0].mxu0 %v839
        %v984 = vpop.f32.mrb[0].mxu0
        %v985 = vadd.f32 0.0, %v984
        %v986 = vpop.f32.mrb[0].mxu0
        %987 = vmatprep.mubr.f32.mxu0 %v847
        %988 = vmatmul.mubr.f32.gmra.mrb[0].mxu0 %v845
        %v989 = vpop.f32.mrb[0].mxu0
        %v990 = vadd.f32 0.0, %v989
        %v991 = vpop.f32.mrb[0].mxu0
        %992 = vmatprep.mubr.f32.mxu0 %v851
        %993 = vmatmul.mubr.f32.gmra.mrb[0].mxu0 %v849
        %v994 = vpop.f32.mrb[0].mxu0
        %v995 = vadd.f32 0.0, %v994
        %v996 = vpop.f32.mrb[0].mxu0
        %997 = vdwg.mxu0
        %v998 = vmul.f32 %v920, 0.00390625
        %v999 = vmul.f32 %v925, 0.00390625
        %v1000 = vmul.f32 %v930, 0.00390625
        %v1001 = vmul.f32 %v935, 0.00390625
        %v1002 = vmul.f32 %v940, 0.00390625
        %v1003 = vmul.f32 %v945, 0.00390625
        %v1004 = vmul.f32 %v950, 0.00390625
        %v1005 = vmul.f32 %v955, 0.00390625
        %v1006 = vmul.f32 %v960, 0.00390625
        %v1007 = vmul.f32 %v965, 0.00390625
        %v1008 = vmul.f32 %v970, 0.00390625
        %v1009 = vmul.f32 %v975, 0.00390625
        %v1010 = vmul.f32 %v980, 0.00390625
        %v1011 = vmul.f32 %v985, 0.00390625
        %v1012 = vmul.f32 %v990, 0.00390625
        %v1013 = vmul.f32 %v995, 0.00390625
        %v1014 = vmul.f32 %v775, %v775
        %v1015 = vmul.f32 %v777, %v777
        %v1016 = vmul.f32 %v779, %v779
        %v1017 = vmul.f32 %v781, %v781
        %v1018 = vmul.f32 %v785, %v785
        %v1019 = vmul.f32 %v787, %v787
        %v1020 = vmul.f32 %v789, %v789
        %v1021 = vmul.f32 %v791, %v791
        %v1022 = vmul.f32 %v795, %v795
        %v1023 = vmul.f32 %v797, %v797
        %v1024 = vmul.f32 %v799, %v799
        %v1025 = vmul.f32 %v801, %v801
        %v1026 = vmul.f32 %v805, %v805
        %v1027 = vmul.f32 %v807, %v807
        %v1028 = vmul.f32 %v809, %v809
        %v1029 = vmul.f32 %v811, %v811
        %v1030 = vmul.f32 %v815, %v815
        %v1031 = vmul.f32 %v817, %v817
        %v1032 = vmul.f32 %v819, %v819
        %v1033 = vmul.f32 %v821, %v821
        %v1034 = vmul.f32 %v825, %v825
        %v1035 = vmul.f32 %v827, %v827
        %v1036 = vmul.f32 %v829, %v829
        %v1037 = vmul.f32 %v831, %v831
        %v1038 = vmul.f32 %v835, %v835
        %v1039 = vmul.f32 %v837, %v837
        %v1040 = vmul.f32 %v839, %v839
        %v1041 = vmul.f32 %v841, %v841
        %v1042 = vmul.f32 %v845, %v845
        %v1043 = vmul.f32 %v847, %v847
        %v1044 = vmul.f32 %v849, %v849
        %v1045 = vmul.f32 %v851, %v851
        %1046 = vmatprep.subr.mxu0 0.0
        %1047 = vmatpush1.msra.mxu0 1.0
        %1048 = vmatprep.subr.mxu0 0.0
        %1049 = vmatpush1.msra.mxu0 1.0
        %1050 = vmatprep.subr.mxu0 0.0
        %1051 = vmatpush1.msra.mxu0 1.0
        %1052 = vmatprep.subr.mxu0 0.0
        %1053 = vmatpush1.msra.mxu0 1.0
        %1054 = vmatprep.subr.mxu0 0.0
        %1055 = vmatpush1.msra.mxu0 1.0
        %1056 = vmatprep.subr.mxu0 0.0
        %1057 = vmatpush1.msra.mxu0 1.0
        %1058 = vmatprep.subr.mxu0 0.0
        %1059 = vmatpush1.msra.mxu0 1.0
        %1060 = vmatprep.subr.mxu0 0.0
        %1061 = vmatpush1.msra.mxu0 1.0
        %1062 = vmatprep.subr.mxu0 0.0
        %1063 = vmatpush1.msra.mxu0 1.0
        %1064 = vmatprep.subr.mxu0 0.0
        %1065 = vmatpush1.msra.mxu0 1.0
        %1066 = vmatprep.subr.mxu0 0.0
        %1067 = vmatpush1.msra.mxu0 1.0
        %1068 = vmatprep.subr.mxu0 0.0
        %1069 = vmatpush1.msra.mxu0 1.0
        %1070 = vmatprep.subr.mxu0 0.0
        %1071 = vmatpush1.msra.mxu0 1.0
        %1072 = vmatprep.subr.mxu0 0.0
        %1073 = vmatpush1.msra.mxu0 1.0
        %1074 = vmatprep.subr.mxu0 0.0
        %1075 = vmatpush1.msra.mxu0 1.0
        %1076 = vmatprep.subr.mxu0 0.0
        %1077 = vmatpush1.msra.mxu0 1.0
        %1078 = vmatprep.subr.mxu0 0.0
        %1079 = vmatpush1.msra.mxu0 1.0
        %1080 = vmatprep.subr.mxu0 0.0
        %1081 = vmatpush1.msra.mxu0 1.0
        %1082 = vmatprep.subr.mxu0 0.0
        %1083 = vmatpush1.msra.mxu0 1.0
        %1084 = vmatprep.subr.mxu0 0.0
        %1085 = vmatpush1.msra.mxu0 1.0
        %1086 = vmatprep.subr.mxu0 0.0
        %1087 = vmatpush1.msra.mxu0 1.0
        %1088 = vmatprep.subr.mxu0 0.0
        %1089 = vmatpush1.msra.mxu0 1.0
        %1090 = vmatprep.subr.mxu0 0.0
        %1091 = vmatpush1.msra.mxu0 1.0
        %1092 = vmatprep.subr.mxu0 0.0
        %1093 = vmatpush1.msra.mxu0 1.0
        %1094 = vmatprep.subr.mxu0 0.0
        %1095 = vmatpush1.msra.mxu0 1.0
        %1096 = vmatprep.subr.mxu0 0.0
        %1097 = vmatpush1.msra.mxu0 1.0
        %1098 = vmatprep.subr.mxu0 0.0
        %1099 = vmatpush1.msra.mxu0 1.0
        %1100 = vmatprep.subr.mxu0 0.0
        %1101 = vmatpush1.msra.mxu0 1.0
        %1102 = vmatprep.subr.mxu0 0.0
        %1103 = vmatpush1.msra.mxu0 1.0
        %1104 = vmatprep.subr.mxu0 0.0
        %1105 = vmatpush1.msra.mxu0 1.0
        %1106 = vmatprep.subr.mxu0 0.0
        %1107 = vmatpush1.msra.mxu0 1.0
        %1108 = vmatprep.subr.mxu0 0.0
        %1109 = vmatpush1.msra.mxu0 1.0
        %1110 = vmatprep.mubr.f32.mxu0 %v1015
        %1111 = vmatmul.mubr.f32.gmra.mrb[0].mxu0 %v1014
        %v1112 = vpop.f32.mrb[0].mxu0
        %v1113 = vadd.f32 0.0, %v1112
        %v1114 = vpop.f32.mrb[0].mxu0
        %1115 = vmatprep.mubr.f32.mxu0 %v1017
        %1116 = vmatmul.mubr.f32.gmra.mrb[0].mxu0 %v1016
        %v1117 = vpop.f32.mrb[0].mxu0
        %v1118 = vadd.f32 0.0, %v1117
        %v1119 = vpop.f32.mrb[0].mxu0
        %1120 = vmatprep.mubr.f32.mxu0 %v1019
        %1121 = vmatmul.mubr.f32.gmra.mrb[0].mxu0 %v1018
        %v1122 = vpop.f32.mrb[0].mxu0
        %v1123 = vadd.f32 0.0, %v1122
        %v1124 = vpop.f32.mrb[0].mxu0
        %1125 = vmatprep.mubr.f32.mxu0 %v1021
        %1126 = vmatmul.mubr.f32.gmra.mrb[0].mxu0 %v1020
        %v1127 = vpop.f32.mrb[0].mxu0
        %v1128 = vadd.f32 0.0, %v1127
        %v1129 = vpop.f32.mrb[0].mxu0
        %1130 = vmatprep.mubr.f32.mxu0 %v1023
        %1131 = vmatmul.mubr.f32.gmra.mrb[0].mxu0 %v1022
        %v1132 = vpop.f32.mrb[0].mxu0
        %v1133 = vadd.f32 0.0, %v1132
        %v1134 = vpop.f32.mrb[0].mxu0
        %1135 = vmatprep.mubr.f32.mxu0 %v1025
        %1136 = vmatmul.mubr.f32.gmra.mrb[0].mxu0 %v1024
        %v1137 = vpop.f32.mrb[0].mxu0
        %v1138 = vadd.f32 0.0, %v1137
        %v1139 = vpop.f32.mrb[0].mxu0
        %1140 = vmatprep.mubr.f32.mxu0 %v1027
        %1141 = vmatmul.mubr.f32.gmra.mrb[0].mxu0 %v1026
        %v1142 = vpop.f32.mrb[0].mxu0
        %v1143 = vadd.f32 0.0, %v1142
        %v1144 = vpop.f32.mrb[0].mxu0
        %1145 = vmatprep.mubr.f32.mxu0 %v1029
        %1146 = vmatmul.mubr.f32.gmra.mrb[0].mxu0 %v1028
        %v1147 = vpop.f32.mrb[0].mxu0
        %v1148 = vadd.f32 0.0, %v1147
        %v1149 = vpop.f32.mrb[0].mxu0
        %1150 = vmatprep.mubr.f32.mxu0 %v1031
        %1151 = vmatmul.mubr.f32.gmra.mrb[0].mxu0 %v1030
        %v1152 = vpop.f32.mrb[0].mxu0
        %v1153 = vadd.f32 0.0, %v1152
        %v1154 = vpop.f32.mrb[0].mxu0
        %1155 = vmatprep.mubr.f32.mxu0 %v1033
        %1156 = vmatmul.mubr.f32.gmra.mrb[0].mxu0 %v1032
        %v1157 = vpop.f32.mrb[0].mxu0
        %v1158 = vadd.f32 0.0, %v1157
        %v1159 = vpop.f32.mrb[0].mxu0
        %1160 = vmatprep.mubr.f32.mxu0 %v1035
        %1161 = vmatmul.mubr.f32.gmra.mrb[0].mxu0 %v1034
        %v1162 = vpop.f32.mrb[0].mxu0
        %v1163 = vadd.f32 0.0, %v1162
        %v1164 = vpop.f32.mrb[0].mxu0
        %1165 = vmatprep.mubr.f32.mxu0 %v1037
        %1166 = vmatmul.mubr.f32.gmra.mrb[0].mxu0 %v1036
        %v1167 = vpop.f32.mrb[0].mxu0
        %v1168 = vadd.f32 0.0, %v1167
        %v1169 = vpop.f32.mrb[0].mxu0
        %1170 = vmatprep.mubr.f32.mxu0 %v1039
        %1171 = vmatmul.mubr.f32.gmra.mrb[0].mxu0 %v1038
        %v1172 = vpop.f32.mrb[0].mxu0
        %v1173 = vadd.f32 0.0, %v1172
        %v1174 = vpop.f32.mrb[0].mxu0
        %1175 = vmatprep.mubr.f32.mxu0 %v1041
        %1176 = vmatmul.mubr.f32.gmra.mrb[0].mxu0 %v1040
        %v1177 = vpop.f32.mrb[0].mxu0
        %v1178 = vadd.f32 0.0, %v1177
        %v1179 = vpop.f32.mrb[0].mxu0
        %1180 = vmatprep.mubr.f32.mxu0 %v1043
        %1181 = vmatmul.mubr.f32.gmra.mrb[0].mxu0 %v1042
        %v1182 = vpop.f32.mrb[0].mxu0
        %v1183 = vadd.f32 0.0, %v1182
        %v1184 = vpop.f32.mrb[0].mxu0
        %1185 = vmatprep.mubr.f32.mxu0 %v1045
        %1186 = vmatmul.mubr.f32.gmra.mrb[0].mxu0 %v1044
        %v1187 = vpop.f32.mrb[0].mxu0
        %v1188 = vadd.f32 0.0, %v1187
        %v1189 = vpop.f32.mrb[0].mxu0
        %1190 = vdwg.mxu0
        %v1191 = vmul.f32 %v1113, 0.00390625
        %v1192 = vmul.f32 %v1118, 0.00390625
        %v1193 = vmul.f32 %v1123, 0.00390625
        %v1194 = vmul.f32 %v1128, 0.00390625
        %v1195 = vmul.f32 %v1133, 0.00390625
        %v1196 = vmul.f32 %v1138, 0.00390625
        %v1197 = vmul.f32 %v1143, 0.00390625
        %v1198 = vmul.f32 %v1148, 0.00390625
        %v1199 = vmul.f32 %v1153, 0.00390625
        %v1200 = vmul.f32 %v1158, 0.00390625
        %v1201 = vmul.f32 %v1163, 0.00390625
        %v1202 = vmul.f32 %v1168, 0.00390625
        %v1203 = vmul.f32 %v1173, 0.00390625
        %v1204 = vmul.f32 %v1178, 0.00390625
        %v1205 = vmul.f32 %v1183, 0.00390625
        %v1206 = vmul.f32 %v1188, 0.00390625
        %v1207 = vmul.f32 %v998, %v998
        %v1208 = vmul.f32 %v999, %v999
        %v1209 = vmul.f32 %v1000, %v1000
        %v1210 = vmul.f32 %v1001, %v1001
        %v1211 = vmul.f32 %v1002, %v1002
        %v1212 = vmul.f32 %v1003, %v1003
        %v1213 = vmul.f32 %v1004, %v1004
        %v1214 = vmul.f32 %v1005, %v1005
        %v1215 = vmul.f32 %v1006, %v1006
        %v1216 = vmul.f32 %v1007, %v1007
        %v1217 = vmul.f32 %v1008, %v1008
        %v1218 = vmul.f32 %v1009, %v1009
        %v1219 = vmul.f32 %v1010, %v1010
        %v1220 = vmul.f32 %v1011, %v1011
        %v1221 = vmul.f32 %v1012, %v1012
        %v1222 = vmul.f32 %v1013, %v1013
        %v1223 = vsub.f32 %v1191, %v1207
        %v1224 = vsub.f32 %v1192, %v1208
        %v1225 = vsub.f32 %v1193, %v1209
        %v1226 = vsub.f32 %v1194, %v1210
        %v1227 = vsub.f32 %v1195, %v1211
        %v1228 = vsub.f32 %v1196, %v1212
        %v1229 = vsub.f32 %v1197, %v1213
        %v1230 = vsub.f32 %v1198, %v1214
        %v1231 = vsub.f32 %v1199, %v1215
        %v1232 = vsub.f32 %v1200, %v1216
        %v1233 = vsub.f32 %v1201, %v1217
        %v1234 = vsub.f32 %v1202, %v1218
        %v1235 = vsub.f32 %v1203, %v1219
        %v1236 = vsub.f32 %v1204, %v1220
        %v1237 = vsub.f32 %v1205, %v1221
        %v1238 = vsub.f32 %v1206, %v1222
        %1240 = vset.pattern.permute.xlu0 0
        %1241 = vperm.xlu0 %1240, %v998
        %v1242 = vpop.permute.xlu0 %1241
        %1245 = vset.pattern.permute.xlu0 0
        %1246 = vperm.xlu0 %1245, %v999
        %v1247 = vpop.permute.xlu0 %1246
        %1250 = vset.pattern.permute.xlu0 0
        %1251 = vperm.xlu0 %1250, %v1000
        %v1252 = vpop.permute.xlu0 %1251
        %1255 = vset.pattern.permute.xlu0 0
        %1256 = vperm.xlu0 %1255, %v1001
        %v1257 = vpop.permute.xlu0 %1256
        %1260 = vset.pattern.permute.xlu0 0
        %1261 = vperm.xlu0 %1260, %v1002
        %v1262 = vpop.permute.xlu0 %1261
        %1265 = vset.pattern.permute.xlu0 0
        %1266 = vperm.xlu0 %1265, %v1003
        %v1267 = vpop.permute.xlu0 %1266
        %1270 = vset.pattern.permute.xlu0 0
        %1271 = vperm.xlu0 %1270, %v1004
        %v1272 = vpop.permute.xlu0 %1271
        %1275 = vset.pattern.permute.xlu0 0
        %1276 = vperm.xlu0 %1275, %v1005
        %v1277 = vpop.permute.xlu0 %1276
        %1280 = vset.pattern.permute.xlu0 0
        %1281 = vperm.xlu0 %1280, %v1006
        %v1282 = vpop.permute.xlu0 %1281
        %1285 = vset.pattern.permute.xlu0 0
        %1286 = vperm.xlu0 %1285, %v1007
        %v1287 = vpop.permute.xlu0 %1286
        %1290 = vset.pattern.permute.xlu0 0
        %1291 = vperm.xlu0 %1290, %v1008
        %v1292 = vpop.permute.xlu0 %1291
        %1295 = vset.pattern.permute.xlu0 0
        %1296 = vperm.xlu0 %1295, %v1009
        %v1297 = vpop.permute.xlu0 %1296
        %1300 = vset.pattern.permute.xlu0 0
        %1301 = vperm.xlu0 %1300, %v1010
        %v1302 = vpop.permute.xlu0 %1301
        %1305 = vset.pattern.permute.xlu0 0
        %1306 = vperm.xlu0 %1305, %v1011
        %v1307 = vpop.permute.xlu0 %1306
        %1310 = vset.pattern.permute.xlu0 0
        %1311 = vperm.xlu0 %1310, %v1012
        %v1312 = vpop.permute.xlu0 %1311
        %1315 = vset.pattern.permute.xlu0 0
        %1316 = vperm.xlu0 %1315, %v1013
        %v1317 = vpop.permute.xlu0 %1316
        %v1319 = vsub.f32 %v775, %v1242
        %v1320 = vsub.f32 %v777, %v1242
        %v1321 = vsub.f32 %v779, %v1247
        %v1322 = vsub.f32 %v781, %v1247
        %v1323 = vsub.f32 %v785, %v1252
        %v1324 = vsub.f32 %v787, %v1252
        %v1325 = vsub.f32 %v789, %v1257
        %v1326 = vsub.f32 %v791, %v1257
        %v1327 = vsub.f32 %v795, %v1262
        %v1328 = vsub.f32 %v797, %v1262
        %v1329 = vsub.f32 %v799, %v1267
        %v1330 = vsub.f32 %v801, %v1267
        %v1331 = vsub.f32 %v805, %v1272
        %v1332 = vsub.f32 %v807, %v1272
        %v1333 = vsub.f32 %v809, %v1277
        %v1334 = vsub.f32 %v811, %v1277
        %v1335 = vsub.f32 %v815, %v1282
        %v1336 = vsub.f32 %v817, %v1282
        %v1337 = vsub.f32 %v819, %v1287
        %v1338 = vsub.f32 %v821, %v1287
        %v1339 = vsub.f32 %v825, %v1292
        %v1340 = vsub.f32 %v827, %v1292
        %v1341 = vsub.f32 %v829, %v1297
        %v1342 = vsub.f32 %v831, %v1297
        %v1343 = vsub.f32 %v835, %v1302
        %v1344 = vsub.f32 %v837, %v1302
        %v1345 = vsub.f32 %v839, %v1307
        %v1346 = vsub.f32 %v841, %v1307
        %v1347 = vsub.f32 %v845, %v1312
        %v1348 = vsub.f32 %v847, %v1312
        %v1349 = vsub.f32 %v849, %v1317
        %v1350 = vsub.f32 %v851, %v1317
        %v1351 = vadd.f32 %v1223, 1e-05
        %v1352 = vadd.f32 %v1224, 1e-05
        %v1353 = vadd.f32 %v1225, 1e-05
        %v1354 = vadd.f32 %v1226, 1e-05
        %v1355 = vadd.f32 %v1227, 1e-05
        %v1356 = vadd.f32 %v1228, 1e-05
        %v1357 = vadd.f32 %v1229, 1e-05
        %v1358 = vadd.f32 %v1230, 1e-05
        %v1359 = vadd.f32 %v1231, 1e-05
        %v1360 = vadd.f32 %v1232, 1e-05
        %v1361 = vadd.f32 %v1233, 1e-05
        %v1362 = vadd.f32 %v1234, 1e-05
        %v1363 = vadd.f32 %v1235, 1e-05
        %v1364 = vadd.f32 %v1236, 1e-05
        %v1365 = vadd.f32 %v1237, 1e-05
        %v1366 = vadd.f32 %v1238, 1e-05
        %v1367 = vrsqrt.pop %v1351
        %v1368 = vrsqrt.pop %v1352
        %v1369 = vrsqrt.pop %v1353
        %v1370 = vrsqrt.pop %v1354
        %v1371 = vrsqrt.pop %v1355
        %v1372 = vrsqrt.pop %v1356
        %v1373 = vrsqrt.pop %v1357
        %v1374 = vrsqrt.pop %v1358
        %v1375 = vrsqrt.pop %v1359
        %v1376 = vrsqrt.pop %v1360
        %v1377 = vrsqrt.pop %v1361
        %v1378 = vrsqrt.pop %v1362
        %v1379 = vrsqrt.pop %v1363
        %v1380 = vrsqrt.pop %v1364
        %v1381 = vrsqrt.pop %v1365
        %v1382 = vrsqrt.pop %v1366
        %1384 = vset.pattern.permute.xlu0 0
        %1385 = vperm.xlu0 %1384, %v1367
        %v1386 = vpop.permute.xlu0 %1385
        %1389 = vset.pattern.permute.xlu0 0
        %1390 = vperm.xlu0 %1389, %v1368
        %v1391 = vpop.permute.xlu0 %1390
        %1394 = vset.pattern.permute.xlu0 0
        %1395 = vperm.xlu0 %1394, %v1369
        %v1396 = vpop.permute.xlu0 %1395
        %1399 = vset.pattern.permute.xlu0 0
        %1400 = vperm.xlu0 %1399, %v1370
        %v1401 = vpop.permute.xlu0 %1400
        %1404 = vset.pattern.permute.xlu0 0
        %1405 = vperm.xlu0 %1404, %v1371
        %v1406 = vpop.permute.xlu0 %1405
        %1409 = vset.pattern.permute.xlu0 0
        %1410 = vperm.xlu0 %1409, %v1372
        %v1411 = vpop.permute.xlu0 %1410
        %1414 = vset.pattern.permute.xlu0 0
        %1415 = vperm.xlu0 %1414, %v1373
        %v1416 = vpop.permute.xlu0 %1415
        %1419 = vset.pattern.permute.xlu0 0
        %1420 = vperm.xlu0 %1419, %v1374
        %v1421 = vpop.permute.xlu0 %1420
        %1424 = vset.pattern.permute.xlu0 0
        %1425 = vperm.xlu0 %1424, %v1375
        %v1426 = vpop.permute.xlu0 %1425
        %1429 = vset.pattern.permute.xlu0 0
        %1430 = vperm.xlu0 %1429, %v1376
        %v1431 = vpop.permute.xlu0 %1430
        %1434 = vset.pattern.permute.xlu0 0
        %1435 = vperm.xlu0 %1434, %v1377
        %v1436 = vpop.permute.xlu0 %1435
        %1439 = vset.pattern.permute.xlu0 0
        %1440 = vperm.xlu0 %1439, %v1378
        %v1441 = vpop.permute.xlu0 %1440
        %1444 = vset.pattern.permute.xlu0 0
        %1445 = vperm.xlu0 %1444, %v1379
        %v1446 = vpop.permute.xlu0 %1445
        %1449 = vset.pattern.permute.xlu0 0
        %1450 = vperm.xlu0 %1449, %v1380
        %v1451 = vpop.permute.xlu0 %1450
        %1454 = vset.pattern.permute.xlu0 0
        %1455 = vperm.xlu0 %1454, %v1381
        %v1456 = vpop.permute.xlu0 %1455
        %1459 = vset.pattern.permute.xlu0 0
        %1460 = vperm.xlu0 %1459, %v1382
        %v1461 = vpop.permute.xlu0 %1460
        %v1463 = vmul.f32 %v1319, %v1386
        %v1464 = vmul.f32 %v1320, %v1386
        %v1465 = vmul.f32 %v1321, %v1391
        %v1466 = vmul.f32 %v1322, %v1391
        %v1467 = vmul.f32 %v1323, %v1396
        %v1468 = vmul.f32 %v1324, %v1396
        %v1469 = vmul.f32 %v1325, %v1401
        %v1470 = vmul.f32 %v1326, %v1401
        %v1471 = vmul.f32 %v1327, %v1406
        %v1472 = vmul.f32 %v1328, %v1406
        %v1473 = vmul.f32 %v1329, %v1411
        %v1474 = vmul.f32 %v1330, %v1411
        %v1475 = vmul.f32 %v1331, %v1416
        %v1476 = vmul.f32 %v1332, %v1416
        %v1477 = vmul.f32 %v1333, %v1421
        %v1478 = vmul.f32 %v1334, %v1421
        %v1479 = vmul.f32 %v1335, %v1426
        %v1480 = vmul.f32 %v1336, %v1426
        %v1481 = vmul.f32 %v1337, %v1431
        %v1482 = vmul.f32 %v1338, %v1431
        %v1483 = vmul.f32 %v1339, %v1436
        %v1484 = vmul.f32 %v1340, %v1436
        %v1485 = vmul.f32 %v1341, %v1441
        %v1486 = vmul.f32 %v1342, %v1441
        %v1487 = vmul.f32 %v1343, %v1446
        %v1488 = vmul.f32 %v1344, %v1446
        %v1489 = vmul.f32 %v1345, %v1451
        %v1490 = vmul.f32 %v1346, %v1451
        %v1491 = vmul.f32 %v1347, %v1456
        %v1492 = vmul.f32 %v1348, %v1456
        %v1493 = vmul.f32 %v1349, %v1461
        %v1494 = vmul.f32 %v1350, %v1461
        %v1495 = vld [vmem:[%s4] sm:$0x3]
        %v1497 = vlaneseq
        %v1498 = vshrl.u32 %v1497, 7
        %v1499 = vsub.s32 0, %v1498
        %v1500 = vrot.slane %v1495, %v1499
        %v1501 = vlaneseq
        %v1502 = vshrl.u32 %v1501, 7
        %v1503 = vsub.s32 1, %v1502
        %v1504 = vrot.slane %v1495, %v1503
        %v1507 = vmul.f32 %v1463, %v1500
        %v1508 = vmul.f32 %v1464, %v1504
        %v1509 = vmul.f32 %v1465, %v1500
        %v1510 = vmul.f32 %v1466, %v1504
        %v1511 = vmul.f32 %v1467, %v1500
        %v1512 = vmul.f32 %v1468, %v1504
        %v1513 = vmul.f32 %v1469, %v1500
        %v1514 = vmul.f32 %v1470, %v1504
        %v1515 = vmul.f32 %v1471, %v1500
        %v1516 = vmul.f32 %v1472, %v1504
        %v1517 = vmul.f32 %v1473, %v1500
        %v1518 = vmul.f32 %v1474, %v1504
        %v1519 = vmul.f32 %v1475, %v1500
        %v1520 = vmul.f32 %v1476, %v1504
        %v1521 = vmul.f32 %v1477, %v1500
        %v1522 = vmul.f32 %v1478, %v1504
        %v1523 = vmul.f32 %v1479, %v1500
        %v1524 = vmul.f32 %v1480, %v1504
        %v1525 = vmul.f32 %v1481, %v1500
        %v1526 = vmul.f32 %v1482, %v1504
        %v1527 = vmul.f32 %v1483, %v1500
        %v1528 = vmul.f32 %v1484, %v1504
        %v1529 = vmul.f32 %v1485, %v1500
        %v1530 = vmul.f32 %v1486, %v1504
        %v1531 = vmul.f32 %v1487, %v1500
        %v1532 = vmul.f32 %v1488, %v1504
        %v1533 = vmul.f32 %v1489, %v1500
        %v1534 = vmul.f32 %v1490, %v1504
        %v1535 = vmul.f32 %v1491, %v1500
        %v1536 = vmul.f32 %v1492, %v1504
        %v1537 = vmul.f32 %v1493, %v1500
        %v1538 = vmul.f32 %v1494, %v1504
        %v1539 = vld [vmem:[%s5] sm:$0x3]
        %v1541 = vlaneseq
        %v1542 = vshrl.u32 %v1541, 7
        %v1543 = vsub.s32 0, %v1542
        %v1544 = vrot.slane %v1539, %v1543
        %v1545 = vlaneseq
        %v1546 = vshrl.u32 %v1545, 7
        %v1547 = vsub.s32 1, %v1546
        %v1548 = vrot.slane %v1539, %v1547
        %v1551 = vadd.f32 %v1507, %v1544
        %v1552 = vadd.f32 %v1508, %v1548
        %v1553 = vadd.f32 %v1509, %v1544
        %v1554 = vadd.f32 %v1510, %v1548
        %v1555 = vadd.f32 %v1511, %v1544
        %v1556 = vadd.f32 %v1512, %v1548
        %v1557 = vadd.f32 %v1513, %v1544
        %v1558 = vadd.f32 %v1514, %v1548
        %v1559 = vadd.f32 %v1515, %v1544
        %v1560 = vadd.f32 %v1516, %v1548
        %v1561 = vadd.f32 %v1517, %v1544
        %v1562 = vadd.f32 %v1518, %v1548
        %v1563 = vadd.f32 %v1519, %v1544
        %v1564 = vadd.f32 %v1520, %v1548
        %v1565 = vadd.f32 %v1521, %v1544
        %v1566 = vadd.f32 %v1522, %v1548
        %v1567 = vadd.f32 %v1523, %v1544
        %v1568 = vadd.f32 %v1524, %v1548
        %v1569 = vadd.f32 %v1525, %v1544
        %v1570 = vadd.f32 %v1526, %v1548
        %v1571 = vadd.f32 %v1527, %v1544
        %v1572 = vadd.f32 %v1528, %v1548
        %v1573 = vadd.f32 %v1529, %v1544
        %v1574 = vadd.f32 %v1530, %v1548
        %v1575 = vadd.f32 %v1531, %v1544
        %v1576 = vadd.f32 %v1532, %v1548
        %v1577 = vadd.f32 %v1533, %v1544
        %v1578 = vadd.f32 %v1534, %v1548
        %v1579 = vadd.f32 %v1535, %v1544
        %v1580 = vadd.f32 %v1536, %v1548
        %v1581 = vadd.f32 %v1537, %v1544
        %v1582 = vadd.f32 %v1538, %v1548
        %v1583 = vmax.f32 %v1551, 0.0
        %v1584 = vmax.f32 %v1552, 0.0
        %v1585 = vmax.f32 %v1553, 0.0
        %v1586 = vmax.f32 %v1554, 0.0
        %v1587 = vmax.f32 %v1555, 0.0
        %v1588 = vmax.f32 %v1556, 0.0
        %v1589 = vmax.f32 %v1557, 0.0
        %v1590 = vmax.f32 %v1558, 0.0
        %v1591 = vmax.f32 %v1559, 0.0
        %v1592 = vmax.f32 %v1560, 0.0
        %v1593 = vmax.f32 %v1561, 0.0
        %v1594 = vmax.f32 %v1562, 0.0
        %v1595 = vmax.f32 %v1563, 0.0
        %v1596 = vmax.f32 %v1564, 0.0
        %v1597 = vmax.f32 %v1565, 0.0
        %v1598 = vmax.f32 %v1566, 0.0
        %v1599 = vmax.f32 %v1567, 0.0
        %v1600 = vmax.f32 %v1568, 0.0
        %v1601 = vmax.f32 %v1569, 0.0
        %v1602 = vmax.f32 %v1570, 0.0
        %v1603 = vmax.f32 %v1571, 0.0
        %v1604 = vmax.f32 %v1572, 0.0
        %v1605 = vmax.f32 %v1573, 0.0
        %v1606 = vmax.f32 %v1574, 0.0
        %v1607 = vmax.f32 %v1575, 0.0
        %v1608 = vmax.f32 %v1576, 0.0
        %v1609 = vmax.f32 %v1577, 0.0
        %v1610 = vmax.f32 %v1578, 0.0
        %v1611 = vmax.f32 %v1579, 0.0
        %v1612 = vmax.f32 %v1580, 0.0
        %v1613 = vmax.f32 %v1581, 0.0
        %v1614 = vmax.f32 %v1582, 0.0
        %v1615 = vld [vmem:[%s6] sm:$0x3]
        %v1616 = vld [vmem:[#allocation7] sm:$0x1]
        %1618 = vset.pattern.permute.xlu0 0
        %1619 = vperm.xlu0 %1618, %v1616
        %v1620 = vpop.permute.xlu0 %1619
        %v1622 = vlaneseq
        %v1623 = vshrl.u32 %v1622, 7
        %v1624 = vsub.s32 0, %v1623
        %v1625 = vrot.slane %v1620, %v1624
        %v1627 = vlaneseq
        %v1628 = vshrl.u32 %v1627, 7
        %v1629 = vsub.s32 0, %v1628
        %v1630 = vrot.slane %v1615, %v1629
        %v1631 = vlaneseq
        %v1632 = vshrl.u32 %v1631, 7
        %v1633 = vsub.s32 1, %v1632
        %v1634 = vrot.slane %v1615, %v1633
        %1637 = vmatprep.subr.mxu0 %v1584
        %1638 = vmatpush1.xpose.msra.mxu0 %v1583
        %1639 = vmatprep.subr.mxu0 %v1586
        %1640 = vmatpush1.xpose.msra.mxu0 %v1585
        %1641 = vmatprep.subr.mxu0 %v1588
        %1642 = vmatpush1.xpose.msra.mxu0 %v1587
        %1643 = vmatprep.subr.mxu0 %v1590
        %1644 = vmatpush1.xpose.msra.mxu0 %v1589
        %1645 = vmatprep.subr.mxu0 %v1592
        %1646 = vmatpush1.xpose.msra.mxu0 %v1591
        %1647 = vmatprep.subr.mxu0 %v1594
        %1648 = vmatpush1.xpose.msra.mxu0 %v1593
        %1649 = vmatprep.subr.mxu0 %v1596
        %1650 = vmatpush1.xpose.msra.mxu0 %v1595
        %1651 = vmatprep.subr.mxu0 %v1598
        %1652 = vmatpush1.xpose.msra.mxu0 %v1597
        %1653 = vmatprep.subr.mxu0 %v1600
        %1654 = vmatpush1.xpose.msra.mxu0 %v1599
        %1655 = vmatprep.subr.mxu0 %v1602
        %1656 = vmatpush1.xpose.msra.mxu0 %v1601
        %1657 = vmatprep.subr.mxu0 %v1604
        %1658 = vmatpush1.xpose.msra.mxu0 %v1603
        %1659 = vmatprep.subr.mxu0 %v1606
        %1660 = vmatpush1.xpose.msra.mxu0 %v1605
        %1661 = vmatprep.subr.mxu0 %v1608
        %1662 = vmatpush1.xpose.msra.mxu0 %v1607
        %1663 = vmatprep.subr.mxu0 %v1610
        %1664 = vmatpush1.xpose.msra.mxu0 %v1609
        %1665 = vmatprep.subr.mxu0 %v1612
        %1666 = vmatpush1.xpose.msra.mxu0 %v1611
        %1667 = vmatprep.subr.mxu0 %v1614
        %1668 = vmatpush1.xpose.msra.mxu0 %v1613
        %1669 = vmatprep.subr.mxu0 0.0
        %1670 = vmatpush1.xpose.msra.mxu0 0.0
        %1671 = vmatprep.subr.mxu0 0.0
        %1672 = vmatpush1.xpose.msra.mxu0 0.0
        %1673 = vmatprep.subr.mxu0 0.0
        %1674 = vmatpush1.xpose.msra.mxu0 0.0
        %1675 = vmatprep.subr.mxu0 0.0
        %1676 = vmatpush1.xpose.msra.mxu0 0.0
        %1677 = vmatprep.subr.mxu0 0.0
        %1678 = vmatpush1.xpose.msra.mxu0 0.0
        %1679 = vmatprep.subr.mxu0 0.0
        %1680 = vmatpush1.xpose.msra.mxu0 0.0
        %1681 = vmatprep.subr.mxu0 0.0
        %1682 = vmatpush1.xpose.msra.mxu0 0.0
        %1683 = vmatprep.subr.mxu0 0.0
        %1684 = vmatpush1.xpose.msra.mxu0 0.0
        %1685 = vmatprep.subr.mxu0 0.0
        %1686 = vmatpush1.xpose.msra.mxu0 0.0
        %1687 = vmatprep.subr.mxu0 0.0
        %1688 = vmatpush1.xpose.msra.mxu0 0.0
        %1689 = vmatprep.subr.mxu0 0.0
        %1690 = vmatpush1.xpose.msra.mxu0 0.0
        %1691 = vmatprep.subr.mxu0 0.0
        %1692 = vmatpush1.xpose.msra.mxu0 0.0
        %1693 = vmatprep.subr.mxu0 0.0
        %1694 = vmatpush1.xpose.msra.mxu0 0.0
        %1695 = vmatprep.subr.mxu0 0.0
        %1696 = vmatpush1.xpose.msra.mxu0 0.0
        %1697 = vmatprep.subr.mxu0 0.0
        %1698 = vmatpush1.xpose.msra.mxu0 0.0
        %1699 = vmatprep.subr.mxu0 0.0
        %1700 = vmatpush1.xpose.msra.mxu0 0.0
        %1701 = vmatprep.mubr.f32.mxu0 %v1634
        %1702 = vmatmul.mubr.f32.gmra.mrb[0].mxu0 %v1630
        %v1703 = vpop.f32.mrb[0].mxu0
        %v1704 = vadd.f32 %v1625, %v1703
        %v1705 = vpop.f32.mrb[0].mxu0
        %1706 = vdwg.mxu0
        %1707 = vst [vmem:[%s598] sm:$0x1] %v1704
        %v1708 = vld [vmem:[#allocation2] sm:$0x1]
        %vm1709 = vcmask 1040384
        %v1710 = vsel %vm1709, %v1704, -inf
        %1711 = vmax.xlane.f32.xlu0 %v1710
        %v1712 = vpop.xlane.xlu0 %1711
        %v1713 = vmax.f32 %v1708, %v1712
        %v1714 = vsub.f32 %v1708, %v1713
        %v1715 = vmul.f32 %v1714, 1.442695
        %v1716 = vpow.pop %v1715
        %1718 = vset.pattern.permute.xlu0 0
        %1719 = vperm.xlu0 %1718, %v1713
        %v1720 = vpop.permute.xlu0 %1719
        %v1722 = vlaneseq
        %v1723 = vshrl.u32 %v1722, 7
        %v1724 = vsub.s32 0, %v1723
        %v1725 = vrot.slane %v1720, %v1724
        %v1726 = vsub.f32 %v1704, %v1725
        %v1727 = vmul.f32 %v1726, 1.442695
        %v1728 = vpow.pop %v1727
        %v1729 = vld [vmem:[#allocation3] sm:$0x1]
        %v1730 = vmul.f32 %v1716, %v1729
        %v1731 = vsel %vm1709, %v1728, 0.0
        %1732 = vadd.xlane.f32.xlu0 %v1731
        %v1733 = vpop.xlane.xlu0 %1732
        %v1734 = vadd.f32 %v1730, %v1733
        %vm1735 = vcmask 0
        %1736 = vst.msk [vmem:[#allocation3] sm:$0x1] %vm1735, %v1734
        %v1737 = vld [vmem:[#allocation4] sm:$0x1]
        %1739 = vset.pattern.permute.xlu0 0
        %1740 = vperm.xlu0 %1739, %v1716
        %v1741 = vpop.permute.xlu0 %1740
        %v1743 = vlaneseq
        %v1744 = vshrl.u32 %v1743, 7
        %v1745 = vsub.s32 0, %v1744
        %v1746 = vrot.slane %v1741, %v1745
        %v1747 = vmul.f32 %v1746, %v1737
        %v1748 = vpack.c.bf16 %v1728, %v1728
        %1749 = vmatprep.subr.bf16.mxu0 0
        %1750 = vmatpush1.bf16.msra.mxu0 %v624
        %1751 = vmatprep.subr.bf16.mxu0 0
        %1752 = vmatpush1.bf16.msra.mxu0 %v625
        %1753 = vmatprep.subr.bf16.mxu0 0
        %1754 = vmatpush1.bf16.msra.mxu0 %v626
        %1755 = vmatprep.subr.bf16.mxu0 0
        %1756 = vmatpush1.bf16.msra.mxu0 %v627
        %1757 = vmatprep.subr.bf16.mxu0 0
        %1758 = vmatpush1.bf16.msra.mxu0 %v628
        %1759 = vmatprep.subr.bf16.mxu0 0
        %1760 = vmatpush1.bf16.msra.mxu0 %v629
        %1761 = vmatprep.subr.bf16.mxu0 0
        %1762 = vmatpush1.bf16.msra.mxu0 %v630
        %1763 = vmatprep.subr.bf16.mxu0 0
        %1764 = vmatpush1.bf16.msra.mxu0 %v631
        %1765 = vmatprep.subr.bf16.mxu0 0
        %1766 = vmatpush1.bf16.msra.mxu0 0
        %1767 = vmatprep.subr.bf16.mxu0 0
        %1768 = vmatpush1.bf16.msra.mxu0 0
        %1769 = vmatprep.subr.bf16.mxu0 0
        %1770 = vmatpush1.bf16.msra.mxu0 0
        %1771 = vmatprep.subr.bf16.mxu0 0
        %1772 = vmatpush1.bf16.msra.mxu0 0
        %1773 = vmatprep.subr.bf16.mxu0 0
        %1774 = vmatpush1.bf16.msra.mxu0 0
        %1775 = vmatprep.subr.bf16.mxu0 0
        %1776 = vmatpush1.bf16.msra.mxu0 0
        %1777 = vmatprep.subr.bf16.mxu0 0
        %1778 = vmatpush1.bf16.msra.mxu0 0
        %1779 = vmatprep.subr.bf16.mxu0 0
        %1780 = vmatpush1.bf16.msra.mxu0 0
        %1781 = vmatprep.mubr.bf16.mxu0 0
        %1782 = vmatmul.mubr.bf16.gmra.mrb[0].mxu0 %v1748
        %v1783 = vpop.f32.mrb[0].mxu0
        %v1784 = vadd.f32 0.0, %v1783
        %v1785 = vpop.f32.mrb[0].mxu0
        %v1786 = vpop.f32.mrb[0].mxu0
        %v1787 = vpop.f32.mrb[0].mxu0
        %1788 = vdwg.mxu0
        %v1789 = vadd.f32 %v1747, %v1784
        %1790 = vst [vmem:[#allocation4] sm:$0x1] %v1789
        %1791 = vst.msk [vmem:[#allocation2] sm:$0x1] %vm1735, %v1713
        %p1792 = scmp.eq.s32.totalorder %s37, 1
        // Predicated region
        $region93: #{topic_conditioned_forward.1} parent=79 // pred_check
          %p1793 = pneg %p1792
        $region94: #{topic_conditioned_forward.1} parent=79 // pred_check_branch
          %1795 = sbr.rel (%p1793) target = $region96
        $region95: #{topic_conditioned_forward.1} parent=79 // pred_region
          %v1796 = vld [vmem:[#allocation3] sm:$0x1]
          %v1797 = vrcp.pop %v1796
          %v1798 = vmul.f32 1.0, %v1797
          %v1799 = vld [vmem:[#allocation2] sm:$0x1]
          %v1800 = vlog2.pop %v1796
          %v1801 = vmul.f32 %v1800, 0.6931472
          %v1802 = vadd.f32 %v1799, %v1801
          %1803 = vst.msk [vmem:[#allocation13] sm:$0x1] %vm1735, %v1802
          %v1804 = vld [vmem:[#allocation4] sm:$0x1]
          %1806 = vset.pattern.permute.xlu0 0
          %1807 = vperm.xlu0 %1806, %v1798
          %v1808 = vpop.permute.xlu0 %1807
          %v1810 = vlaneseq
          %v1811 = vshrl.u32 %v1810, 7
          %v1812 = vsub.s32 0, %v1811
          %v1813 = vrot.slane %v1808, %v1812
          %v1814 = vmul.f32 %v1804, %v1813
          %v1815 = vld [vmem:[%s594] sm:$0x1]
          %v1816 = vld [vmem:[#allocation8] sm:$0xff]
          %v1817 = vld [vmem:[#allocation8 + $0x8] sm:$0xff]
          %v1818 = vld [vmem:[#allocation8 + $0x10] sm:$0xff]
          %v1819 = vld [vmem:[#allocation8 + $0x18] sm:$0xff]
          %v1820 = vld [vmem:[#allocation8 + $0x20] sm:$0xff]
          %v1821 = vld [vmem:[#allocation8 + $0x28] sm:$0xff]
          %v1822 = vld [vmem:[#allocation8 + $0x30] sm:$0xff]
          %v1823 = vld [vmem:[#allocation8 + $0x38] sm:$0xff]
          %v1824 = vld [vmem:[#allocation8 + $0x40] sm:$0xff]
          %v1825 = vld [vmem:[#allocation8 + $0x48] sm:$0xff]
          %v1826 = vld [vmem:[#allocation8 + $0x50] sm:$0xff]
          %v1827 = vld [vmem:[#allocation8 + $0x58] sm:$0xff]
          %v1828 = vld [vmem:[#allocation8 + $0x60] sm:$0xff]
          %v1829 = vld [vmem:[#allocation8 + $0x68] sm:$0xff]
          %v1830 = vld [vmem:[#allocation8 + $0x70] sm:$0xff]
          %v1831 = vld [vmem:[#allocation8 + $0x78] sm:$0xff]
          %v1832 = vld [vmem:[#allocation8 + $0x80] sm:$0xff]
          %v1833 = vld [vmem:[#allocation8 + $0x88] sm:$0xff]
          %v1834 = vld [vmem:[#allocation8 + $0x90] sm:$0xff]
          %v1835 = vld [vmem:[#allocation8 + $0x98] sm:$0xff]
          %v1836 = vld [vmem:[#allocation8 + $0xa0] sm:$0xff]
          %v1837 = vld [vmem:[#allocation8 + $0xa8] sm:$0xff]
          %v1838 = vld [vmem:[#allocation8 + $0xb0] sm:$0xff]
          %v1839 = vld [vmem:[#allocation8 + $0xb8] sm:$0xff]
          %v1840 = vld [vmem:[#allocation8 + $0xc0] sm:$0xff]
          %v1841 = vld [vmem:[#allocation8 + $0xc8] sm:$0xff]
          %v1842 = vld [vmem:[#allocation8 + $0xd0] sm:$0xff]
          %v1843 = vld [vmem:[#allocation8 + $0xd8] sm:$0xff]
          %v1844 = vld [vmem:[#allocation8 + $0xe0] sm:$0xff]
          %v1845 = vld [vmem:[#allocation8 + $0xe8] sm:$0xff]
          %v1846 = vld [vmem:[#allocation8 + $0xf0] sm:$0xff]
          %v1847 = vld [vmem:[#allocation8 + $0xf8] sm:$0xff]
          %v1848 = vld [vmem:[%s10] sm:$0xff]
          %v1849 = vld [vmem:[%s10 + $0x8] sm:$0xff]
          %v1850 = vld [vmem:[%s10 + $0x10] sm:$0xff]
          %v1851 = vld [vmem:[%s10 + $0x18] sm:$0xff]
          %v1852 = vld [vmem:[%s10 + $0x20] sm:$0xff]
          %v1853 = vld [vmem:[%s10 + $0x28] sm:$0xff]
          %v1854 = vld [vmem:[%s10 + $0x30] sm:$0xff]
          %v1855 = vld [vmem:[%s10 + $0x38] sm:$0xff]
          %v1856 = vld [vmem:[%s10 + $0x40] sm:$0xff]
          %v1857 = vld [vmem:[%s10 + $0x48] sm:$0xff]
          %v1858 = vld [vmem:[%s10 + $0x50] sm:$0xff]
          %v1859 = vld [vmem:[%s10 + $0x58] sm:$0xff]
          %v1860 = vld [vmem:[%s10 + $0x60] sm:$0xff]
          %v1861 = vld [vmem:[%s10 + $0x68] sm:$0xff]
          %v1862 = vld [vmem:[%s10 + $0x70] sm:$0xff]
          %v1863 = vld [vmem:[%s10 + $0x78] sm:$0xff]
          %vm1864 = vcmask 523264
          %v1866 = vsel %vm1864, %v1815, 0
          %1868 = vmatprep.subr.mxu0 %v1849
          %1869 = vmatpush1.msra.mxu0 %v1848
          %1870 = vmatprep.subr.mxu0 %v1851
          %1871 = vmatpush1.msra.mxu0 %v1850
          %1872 = vmatprep.subr.mxu0 %v1853
          %1873 = vmatpush1.msra.mxu0 %v1852
          %1874 = vmatprep.subr.mxu0 %v1855
          %1875 = vmatpush1.msra.mxu0 %v1854
          %1876 = vmatprep.subr.mxu0 %v1857
          %1877 = vmatpush1.msra.mxu0 %v1856
          %1878 = vmatprep.subr.mxu0 %v1859
          %1879 = vmatpush1.msra.mxu0 %v1858
          %1880 = vmatprep.subr.mxu0 %v1861
          %1881 = vmatpush1.msra.mxu0 %v1860
          %1882 = vmatprep.subr.mxu0 %v1863
          %1883 = vmatpush1.msra.mxu0 %v1862
          %1884 = vmatprep.subr.mxu0 0.0
          %1885 = vmatpush1.msra.mxu0 0.0
          %1886 = vmatprep.subr.mxu0 0.0
          %1887 = vmatpush1.msra.mxu0 0.0
          %1888 = vmatprep.subr.mxu0 0.0
          %1889 = vmatpush1.msra.mxu0 0.0
          %1890 = vmatprep.subr.mxu0 0.0
          %1891 = vmatpush1.msra.mxu0 0.0
          %1892 = vmatprep.subr.mxu0 0.0
          %1893 = vmatpush1.msra.mxu0 0.0
          %1894 = vmatprep.subr.mxu0 0.0
          %1895 = vmatpush1.msra.mxu0 0.0
          %1896 = vmatprep.subr.mxu0 0.0
          %1897 = vmatpush1.msra.mxu0 0.0
          %1898 = vmatprep.subr.mxu0 0.0
          %1899 = vmatpush1.msra.mxu0 0.0
          %1900 = vmatprep.subr.mxu0 0.0
          %1901 = vmatpush1.msra.mxu0 0.0
          %1902 = vmatprep.subr.mxu0 0.0
          %1903 = vmatpush1.msra.mxu0 0.0
          %1904 = vmatprep.subr.mxu0 0.0
          %1905 = vmatpush1.msra.mxu0 0.0
          %1906 = vmatprep.subr.mxu0 0.0
          %1907 = vmatpush1.msra.mxu0 0.0
          %1908 = vmatprep.subr.mxu0 0.0
          %1909 = vmatpush1.msra.mxu0 0.0
          %1910 = vmatprep.subr.mxu0 0.0
          %1911 = vmatpush1.msra.mxu0 0.0
          %1912 = vmatprep.subr.mxu0 0.0
          %1913 = vmatpush1.msra.mxu0 0.0
          %1914 = vmatprep.subr.mxu0 0.0
          %1915 = vmatpush1.msra.mxu0 0.0
          %1916 = vmatprep.subr.mxu0 0.0
          %1917 = vmatpush1.msra.mxu0 0.0
          %1918 = vmatprep.subr.mxu0 0.0
          %1919 = vmatpush1.msra.mxu0 0.0
          %1920 = vmatprep.subr.mxu0 0.0
          %1921 = vmatpush1.msra.mxu0 0.0
          %1922 = vmatprep.subr.mxu0 0.0
          %1923 = vmatpush1.msra.mxu0 0.0
          %1924 = vmatprep.subr.mxu0 0.0
          %1925 = vmatpush1.msra.mxu0 0.0
          %1926 = vmatprep.subr.mxu0 0.0
          %1927 = vmatpush1.msra.mxu0 0.0
          %1928 = vmatprep.subr.mxu0 0.0
          %1929 = vmatpush1.msra.mxu0 0.0
          %1930 = vmatprep.subr.mxu0 0.0
          %1931 = vmatpush1.msra.mxu0 0.0
          %1932 = vmatprep.mubr.f32.mxu0 0.0
          %1933 = vmatmul.mubr.f32.gmra.mrb[0].mxu0 %v1866
          %v1934 = vpop.f32.mrb[0].mxu0
          %v1935 = vadd.f32 0.0, %v1934
          %v1936 = vpop.f32.mrb[0].mxu0
          %v1937 = vadd.f32 0.0, %v1936
          %1938 = vdwg.mxu0
          %1939 = vmatprep.subr.mxu0 %v1817
          %1940 = vmatpush1.msra.mxu0 %v1816
          %1941 = vmatprep.subr.mxu0 %v1819
          %1942 = vmatpush1.msra.mxu0 %v1818
          %1943 = vmatprep.subr.mxu0 %v1821
          %1944 = vmatpush1.msra.mxu0 %v1820
          %1945 = vmatprep.subr.mxu0 %v1823
          %1946 = vmatpush1.msra.mxu0 %v1822
          %1947 = vmatprep.subr.mxu0 %v1825
          %1948 = vmatpush1.msra.mxu0 %v1824
          %1949 = vmatprep.subr.mxu0 %v1827
          %1950 = vmatpush1.msra.mxu0 %v1826
          %1951 = vmatprep.subr.mxu0 %v1829
          %1952 = vmatpush1.msra.mxu0 %v1828
          %1953 = vmatprep.subr.mxu0 %v1831
          %1954 = vmatpush1.msra.mxu0 %v1830
          %1955 = vmatprep.subr.mxu0 %v1833
          %1956 = vmatpush1.msra.mxu0 %v1832
          %1957 = vmatprep.subr.mxu0 %v1835
          %1958 = vmatpush1.msra.mxu0 %v1834
          %1959 = vmatprep.subr.mxu0 %v1837
          %1960 = vmatpush1.msra.mxu0 %v1836
          %1961 = vmatprep.subr.mxu0 %v1839
          %1962 = vmatpush1.msra.mxu0 %v1838
          %1963 = vmatprep.subr.mxu0 %v1841
          %1964 = vmatpush1.msra.mxu0 %v1840
          %1965 = vmatprep.subr.mxu0 %v1843
          %1966 = vmatpush1.msra.mxu0 %v1842
          %1967 = vmatprep.subr.mxu0 %v1845
          %1968 = vmatpush1.msra.mxu0 %v1844
          %1969 = vmatprep.subr.mxu0 %v1847
          %1970 = vmatpush1.msra.mxu0 %v1846
          %1971 = vmatprep.subr.mxu0 0.0
          %1972 = vmatpush1.msra.mxu0 0.0
          %1973 = vmatprep.subr.mxu0 0.0
          %1974 = vmatpush1.msra.mxu0 0.0
          %1975 = vmatprep.subr.mxu0 0.0
          %1976 = vmatpush1.msra.mxu0 0.0
          %1977 = vmatprep.subr.mxu0 0.0
          %1978 = vmatpush1.msra.mxu0 0.0
          %1979 = vmatprep.subr.mxu0 0.0
          %1980 = vmatpush1.msra.mxu0 0.0
          %1981 = vmatprep.subr.mxu0 0.0
          %1982 = vmatpush1.msra.mxu0 0.0
          %1983 = vmatprep.subr.mxu0 0.0
          %1984 = vmatpush1.msra.mxu0 0.0
          %1985 = vmatprep.subr.mxu0 0.0
          %1986 = vmatpush1.msra.mxu0 0.0
          %1987 = vmatprep.subr.mxu0 0.0
          %1988 = vmatpush1.msra.mxu0 0.0
          %1989 = vmatprep.subr.mxu0 0.0
          %1990 = vmatpush1.msra.mxu0 0.0
          %1991 = vmatprep.subr.mxu0 0.0
          %1992 = vmatpush1.msra.mxu0 0.0
          %1993 = vmatprep.subr.mxu0 0.0
          %1994 = vmatpush1.msra.mxu0 0.0
          %1995 = vmatprep.subr.mxu0 0.0
          %1996 = vmatpush1.msra.mxu0 0.0
          %1997 = vmatprep.subr.mxu0 0.0
          %1998 = vmatpush1.msra.mxu0 0.0
          %1999 = vmatprep.subr.mxu0 0.0
          %2000 = vmatpush1.msra.mxu0 0.0
          %2001 = vmatprep.subr.mxu0 0.0
          %2002 = vmatpush1.msra.mxu0 0.0
          %2003 = vmatprep.mubr.f32.mxu0 0.0
          %2004 = vmatmul.mubr.f32.gmra.mrb[0].mxu0 %v1814
          %v2005 = vpop.f32.mrb[0].mxu0
          %v2006 = vadd.f32 %v1935, %v2005
          %v2007 = vpop.f32.mrb[0].mxu0
          %v2008 = vadd.f32 %v1937, %v2007
          %2009 = vdwg.mxu0
          %v2010 = vld [vmem:[%s11] sm:$0x3]
          %v2012 = vlaneseq
          %v2013 = vshrl.u32 %v2012, 7
          %v2014 = vsub.s32 0, %v2013
          %v2015 = vrot.slane %v2010, %v2014
          %v2016 = vlaneseq
          %v2017 = vshrl.u32 %v2016, 7
          %v2018 = vsub.s32 1, %v2017
          %v2019 = vrot.slane %v2010, %v2018
          %v2022 = vadd.f32 %v2006, %v2015
          %v2023 = vadd.f32 %v2008, %v2019
          %v2024 = vsel %vm1709, %v2022, 0.0
          %v2025 = vsel %vm1709, %v2023, 0.0
          %v2026 = vadd.f32 %v2024, %v2025
          %2027 = vadd.xlane.f32.xlu0 %v2026
          %v2028 = vpop.xlane.xlu0 %2027
          %v2029 = vmul.f32 %v2028, 0.00390625
          %v2030 = vmul.f32 %v2022, %v2022
          %v2031 = vmul.f32 %v2023, %v2023
          %v2032 = vsel %vm1709, %v2030, 0.0
          %v2033 = vsel %vm1709, %v2031, 0.0
          %v2034 = vadd.f32 %v2032, %v2033
          %2035 = vadd.xlane.f32.xlu0 %v2034
          %v2036 = vpop.xlane.xlu0 %2035
          %v2037 = vmul.f32 %v2036, 0.00390625
          %v2038 = vmul.f32 %v2029, %v2029
          %v2039 = vsub.f32 %v2037, %v2038
          %v2040 = vsub.f32 %v2022, %v2029
          %v2041 = vsub.f32 %v2023, %v2029
          %v2042 = vadd.f32 %v2039, 1e-05
          %v2043 = vrsqrt.pop %v2042
          %v2044 = vmul.f32 %v2040, %v2043
          %v2045 = vmul.f32 %v2041, %v2043
          %v2046 = vld [vmem:[%s12] sm:$0x3]
          %v2048 = vlaneseq
          %v2049 = vshrl.u32 %v2048, 7
          %v2050 = vsub.s32 0, %v2049
          %v2051 = vrot.slane %v2046, %v2050
          %v2052 = vlaneseq
          %v2053 = vshrl.u32 %v2052, 7
          %v2054 = vsub.s32 1, %v2053
          %v2055 = vrot.slane %v2046, %v2054
          %v2058 = vmul.f32 %v2044, %v2051
          %v2059 = vmul.f32 %v2045, %v2055
          %v2060 = vld [vmem:[%s13] sm:$0x3]
          %v2062 = vlaneseq
          %v2063 = vshrl.u32 %v2062, 7
          %v2064 = vsub.s32 0, %v2063
          %v2065 = vrot.slane %v2060, %v2064
          %v2066 = vlaneseq
          %v2067 = vshrl.u32 %v2066, 7
          %v2068 = vsub.s32 1, %v2067
          %v2069 = vrot.slane %v2060, %v2068
          %v2072 = vadd.f32 %v2058, %v2065
          %v2073 = vadd.f32 %v2059, %v2069
          %v2074 = vmax.f32 %v2072, 0.0
          %v2075 = vmax.f32 %v2073, 0.0
          %v2076 = vld [vmem:[#allocation11] sm:$0xff]
          %v2077 = vld [vmem:[#allocation11 + $0x8] sm:$0xff]
          %v2078 = vld [vmem:[#allocation11 + $0x10] sm:$0xff]
          %v2079 = vld [vmem:[#allocation11 + $0x18] sm:$0xff]
          %v2080 = vld [vmem:[#allocation11 + $0x20] sm:$0xff]
          %v2081 = vld [vmem:[#allocation11 + $0x28] sm:$0xff]
          %v2082 = vld [vmem:[#allocation11 + $0x30] sm:$0xff]
          %v2083 = vld [vmem:[#allocation11 + $0x38] sm:$0xff]
          %v2084 = vld [vmem:[#allocation11 + $0x40] sm:$0xff]
          %v2085 = vld [vmem:[#allocation11 + $0x48] sm:$0xff]
          %v2086 = vld [vmem:[#allocation11 + $0x50] sm:$0xff]
          %v2087 = vld [vmem:[#allocation11 + $0x58] sm:$0xff]
          %v2088 = vld [vmem:[#allocation11 + $0x60] sm:$0xff]
          %v2089 = vld [vmem:[#allocation11 + $0x68] sm:$0xff]
          %v2090 = vld [vmem:[#allocation11 + $0x70] sm:$0xff]
          %v2091 = vld [vmem:[#allocation11 + $0x78] sm:$0xff]
          %v2092 = vld [vmem:[#allocation11 + $0x80] sm:$0xff]
          %v2093 = vld [vmem:[#allocation11 + $0x88] sm:$0xff]
          %v2094 = vld [vmem:[#allocation11 + $0x90] sm:$0xff]
          %v2095 = vld [vmem:[#allocation11 + $0x98] sm:$0xff]
          %v2096 = vld [vmem:[#allocation11 + $0xa0] sm:$0xff]
          %v2097 = vld [vmem:[#allocation11 + $0xa8] sm:$0xff]
          %v2098 = vld [vmem:[#allocation11 + $0xb0] sm:$0xff]
          %v2099 = vld [vmem:[#allocation11 + $0xb8] sm:$0xff]
          %v2100 = vld [vmem:[#allocation11 + $0xc0] sm:$0xff]
          %v2101 = vld [vmem:[#allocation11 + $0xc8] sm:$0xff]
          %v2102 = vld [vmem:[#allocation11 + $0xd0] sm:$0xff]
          %v2103 = vld [vmem:[#allocation11 + $0xd8] sm:$0xff]
          %v2104 = vld [vmem:[#allocation11 + $0xe0] sm:$0xff]
          %v2105 = vld [vmem:[#allocation11 + $0xe8] sm:$0xff]
          %v2106 = vld [vmem:[#allocation11 + $0xf0] sm:$0xff]
          %v2107 = vld [vmem:[#allocation11 + $0xf8] sm:$0xff]
          %v2108 = vld [vmem:[%s15] sm:$0x1]
          %2109 = vmatprep.subr.mxu0 0.0
          %2110 = vmatpush1.msra.mxu0 %v2076
          %2111 = vmatprep.subr.mxu0 0.0
          %2112 = vmatpush1.msra.mxu0 %v2077
          %2113 = vmatprep.subr.mxu0 0.0
          %2114 = vmatpush1.msra.mxu0 %v2078
          %2115 = vmatprep.subr.mxu0 0.0
          %2116 = vmatpush1.msra.mxu0 %v2079
          %2117 = vmatprep.subr.mxu0 0.0
          %2118 = vmatpush1.msra.mxu0 %v2080
          %2119 = vmatprep.subr.mxu0 0.0
          %2120 = vmatpush1.msra.mxu0 %v2081
          %2121 = vmatprep.subr.mxu0 0.0
          %2122 = vmatpush1.msra.mxu0 %v2082
          %2123 = vmatprep.subr.mxu0 0.0
          %2124 = vmatpush1.msra.mxu0 %v2083
          %2125 = vmatprep.subr.mxu0 0.0
          %2126 = vmatpush1.msra.mxu0 %v2084
          %2127 = vmatprep.subr.mxu0 0.0
          %2128 = vmatpush1.msra.mxu0 %v2085
          %2129 = vmatprep.subr.mxu0 0.0
          %2130 = vmatpush1.msra.mxu0 %v2086
          %2131 = vmatprep.subr.mxu0 0.0
          %2132 = vmatpush1.msra.mxu0 %v2087
          %2133 = vmatprep.subr.mxu0 0.0
          %2134 = vmatpush1.msra.mxu0 %v2088
          %2135 = vmatprep.subr.mxu0 0.0
          %2136 = vmatpush1.msra.mxu0 %v2089
          %2137 = vmatprep.subr.mxu0 0.0
          %2138 = vmatpush1.msra.mxu0 %v2090
          %2139 = vmatprep.subr.mxu0 0.0
          %2140 = vmatpush1.msra.mxu0 %v2091
          %2141 = vmatprep.subr.mxu0 0.0
          %2142 = vmatpush1.msra.mxu0 %v2092
          %2143 = vmatprep.subr.mxu0 0.0
          %2144 = vmatpush1.msra.mxu0 %v2093
          %2145 = vmatprep.subr.mxu0 0.0
          %2146 = vmatpush1.msra.mxu0 %v2094
          %2147 = vmatprep.subr.mxu0 0.0
          %2148 = vmatpush1.msra.mxu0 %v2095
          %2149 = vmatprep.subr.mxu0 0.0
          %2150 = vmatpush1.msra.mxu0 %v2096
          %2151 = vmatprep.subr.mxu0 0.0
          %2152 = vmatpush1.msra.mxu0 %v2097
          %2153 = vmatprep.subr.mxu0 0.0
          %2154 = vmatpush1.msra.mxu0 %v2098
          %2155 = vmatprep.subr.mxu0 0.0
          %2156 = vmatpush1.msra.mxu0 %v2099
          %2157 = vmatprep.subr.mxu0 0.0
          %2158 = vmatpush1.msra.mxu0 %v2100
          %2159 = vmatprep.subr.mxu0 0.0
          %2160 = vmatpush1.msra.mxu0 %v2101
          %2161 = vmatprep.subr.mxu0 0.0
          %2162 = vmatpush1.msra.mxu0 %v2102
          %2163 = vmatprep.subr.mxu0 0.0
          %2164 = vmatpush1.msra.mxu0 %v2103
          %2165 = vmatprep.subr.mxu0 0.0
          %2166 = vmatpush1.msra.mxu0 %v2104
          %2167 = vmatprep.subr.mxu0 0.0
          %2168 = vmatpush1.msra.mxu0 %v2105
          %2169 = vmatprep.subr.mxu0 0.0
          %2170 = vmatpush1.msra.mxu0 %v2106
          %2171 = vmatprep.subr.mxu0 0.0
          %2172 = vmatpush1.msra.mxu0 %v2107
          %2173 = vmatprep.mubr.f32.mxu0 %v2075
          %2174 = vmatmul.mubr.f32.gmra.mrb[0].mxu0 %v2074
          %v2175 = vpop.f32.mrb[0].mxu0
          %v2176 = vadd.f32 %v2108, %v2175
          %v2177 = vpop.f32.mrb[0].mxu0
          %2178 = vdwg.mxu0
          %2179 = vst [vmem:[#allocation14] sm:$0x1] %v2176
        $region96: #{topic_conditioned_forward.1} parent=79 // pred_fallthru
          _
        %p2180 = scmp.lt.s32.totalorder %s37, 1
        %s2181 = scalar_select %p2180, %s37, 1
        %s2182 = scalar_lea.vmem %s16, %s2181
        // Predicated region
        $region97: #{topic_conditioned_forward.1} parent=79 // pred_check
          %p2183 = pneg %p382
        $region98: #{topic_conditioned_forward.1} parent=79 // pred_check_branch
          %2185 = sbr.rel (%p2183) target = $region100
        $region99: #{topic_conditioned_forward.1} parent=79 // pred_region
          _
        $region100: #{topic_conditioned_forward.1} parent=79 // pred_fallthru
          _
        // Predicated region
        $region101: #{topic_conditioned_forward.1} parent=79 // pred_check
          %p2186 = pneg %p403
        $region102: #{topic_conditioned_forward.1} parent=79 // pred_check_branch
          %2188 = sbr.rel (%p2186) target = $region104
        $region103: #{topic_conditioned_forward.1} parent=79 // pred_region
          %s2190 = ssub.s32 16, 16
          %2191 = vsyncadd [#allocation10], %s2190
          %s2193 = sshll.u32 [#allocation13], 4
          %s2194 = int_to_ptr.vmem [resolvable:$true] %s2193
          %2196 = dma.vmem_to_hbm [thread:$0]  %s2194, 16, %s17, [#allocation10]
        $region104: #{topic_conditioned_forward.1} parent=79 // pred_fallthru
          _
        // Predicated region
        $region105: #{topic_conditioned_forward.1} parent=79 // pred_check
          %p2197 = pneg %p424
        $region106: #{topic_conditioned_forward.1} parent=79 // pred_check_branch
          %2199 = sbr.rel (%p2197) target = $region108
        $region107: #{topic_conditioned_forward.1} parent=79 // pred_region
          %s2201 = ssub.s32 16, 16
          %2202 = vsyncadd [#allocation15], %s2201
          %s2204 = sshll.u32 [#allocation14], 4
          %s2205 = int_to_ptr.vmem [resolvable:$true] %s2204
          %2207 = dma.vmem_to_hbm [thread:$0]  %s2205, 16, %s18, [#allocation15]
        $region108: #{topic_conditioned_forward.1} parent=79 // pred_fallthru
          _
        // Predicated region
        $region109: #{topic_conditioned_forward.1} parent=79 // pred_check
          %p2208 = pneg %p403
        $region110: #{topic_conditioned_forward.1} parent=79 // pred_check_branch
          %2210 = sbr.rel (%p2208) target = $region112
        $region111: #{topic_conditioned_forward.1} parent=79 // pred_region
          %2211 = dma.done [#allocation10], 16
        $region112: #{topic_conditioned_forward.1} parent=79 // pred_fallthru
          _
        // Predicated region
        $region113: #{topic_conditioned_forward.1} parent=79 // pred_check
          %p2212 = pneg %p424
        $region114: #{topic_conditioned_forward.1} parent=79 // pred_check_branch
          %2214 = sbr.rel (%p2212) target = $region116
        $region115: #{topic_conditioned_forward.1} parent=79 // pred_region
          %2215 = dma.done [#allocation15], 16
        $region116: #{topic_conditioned_forward.1} parent=79 // pred_fallthru
          _
      $region80: #{topic_conditioned_forward.1} parent=5 // pred_fallthru
        _
      %p2216 = scmp.le.s32.totalorder 2, %s32
      // Predicated region
      $region117: #{topic_conditioned_forward.1} parent=5 // pred_check
        %p2217 = pneg %p2216
      $region118: #{topic_conditioned_forward.1} parent=5 // pred_check_branch
        %2219 = sbr.rel (%p2217) target = $region120
      $region119: #{topic_conditioned_forward.1} parent=5 // pred_region
        %s2220 = ssub.s32 %s32, 2
        // Predicated region
        $region121: #{topic_conditioned_forward.1} parent=119 // pred_check
          %p2221 = pneg %p388
        $region122: #{topic_conditioned_forward.1} parent=119 // pred_check_branch
          %2223 = sbr.rel (%p2221) target = $region124
        $region123: #{topic_conditioned_forward.1} parent=119 // pred_region
          %p2224 = scmp.lt.s32.totalorder %s38, 1
          %s2225 = scalar_select %p2224, %s38, 1
          %s2226 = scalar_lea.vmem %s16, %s2225
        $region124: #{topic_conditioned_forward.1} parent=119 // pred_fallthru
          _
      $region120: #{topic_conditioned_forward.1} parent=5 // pred_fallthru
        _
    $region6: #{topic_conditioned_forward.1} parent=1 // loop_footer
      %s36 = sadd.s32 1, %s32
    $region7: #{topic_conditioned_forward.1} parent=1 // loop_footer_branch
      %31 = sbr.rel target = $region3
    $region8: #{topic_conditioned_forward.1} parent=1 // loop_exit
      _
    %2227 = vsyncpa [#allocation9], 1
    %s2228 = scalar_lea.sflag [#allocation9], 1
    %2229 = vsyncpa %s2228, 1
    %2230 = vsyncpa [#allocation12], 1
    %2231 = vsyncpa [#allocation10], 1
    %s2232 = scalar_lea.sflag [#allocation10], 1
    %2233 = vsyncpa %s2232, 1
    %2234 = vsyncpa [#allocation15], 1

</llo_original>
